<compile_context>
chip_gen: v7x
topology: tpu7x:2x2x1
jax: 0.10.0
libtpu: 0.0.40
codegen_flags: <defaults>
</compile_context>

<pallas_src>
import jax
import jax.numpy as jnp
from jax.experimental import pallas as pl
from jax.experimental.pallas import tpu as pltpu


# ---------------------------------------------------------------------------
# Host-side helpers (plain JAX)
# ---------------------------------------------------------------------------
def channel_shuffle(x, groups):
    """Shuffle channels of an NCHW tensor (torch semantics). Used by the ref."""
    n, c, h, w = x.shape
    cpg = c // groups
    x = x.reshape(n, groups, cpg, h, w)
    x = jnp.transpose(x, (0, 2, 1, 3, 4))
    return x.reshape(n, c, h, w)


def fold_channel_shuffle_into_weight(weight, groups):
    """conv(shuffle(x, g), W) == conv(x, W') — permute the weight's Cin axis."""
    cout, cin, kh, kw = weight.shape
    cpg = cin // groups
    w = weight.reshape(cout, cpg, groups, kh, kw)
    w = jnp.transpose(w, (0, 2, 1, 3, 4))          # (cout, groups, cpg, kh, kw)
    return w.reshape(cout, cin, kh, kw)


def _round_up(v, m):
    return ((v + m - 1) // m) * m


# ---------------------------------------------------------------------------
# Wrapper + Pallas kernel
# ---------------------------------------------------------------------------
def bn_conv_relu_pallas(x, weight, bias, gamma, beta, *,
                        stride=1, padding=0, shuffle_groups=1, eps=1e-5,
                        tm=1024):
    """x: (N, Cin, H, W) f32; weight: (Cout, Cin, KH, KW). Returns NCHW f32."""
    del bias  # per-channel conv bias cancels exactly under BN mean subtraction

    n, cin, h, w = x.shape
    cout, _, kh, kw = weight.shape
    hp, wp = h + 2 * padding, w + 2 * padding
    oh = (hp - kh) // stride + 1
    ow = (wp - kw) // stride + 1

    if shuffle_groups > 1:
        weight = fold_channel_shuffle_into_weight(weight, shuffle_groups)

    cin_p = _round_up(cin, 8)                      # sublane-align contraction
    khkw = kh * kw

    # Weight taps as a (KH*KW, Cout, Cin_p) bf16 stack (stays VMEM resident).
    w_pad = jnp.pad(weight, ((0, 0), (0, cin_p - cin), (0, 0), (0, 0)))
    w_all = jnp.transpose(w_pad, (2, 3, 0, 1)).reshape(khkw, cout, cin_p)
    w_all = w_all.astype(jnp.bfloat16)

    # Flat padded activation: (Cin_p, M') with M' = N*Hp*Wp (lane-dense M').
    m_virt = n * hp * wp
    x_sp = jnp.pad(x, ((0, 0), (0, cin_p - cin),
                       (padding, padding), (padding, padding)))
    xf = jnp.transpose(x_sp, (1, 0, 2, 3)).reshape(cin_p, m_virt)

    # M tile / halo geometry (multiples of 128; no partial blocks anywhere).
    tm = max(128, (int(tm) // 128) * 128)
    tm = min(tm, _round_up(m_virt, 128))
    halo = (kh - 1) * wp + (kw - 1)                # largest static tap shift
    halo_p = max(128, _round_up(halo, 128))
    if tm % halo_p != 0:
        tm = _round_up(tm, halo_p)
    halo_blocks = tm // halo_p
    n_mt = (m_virt + tm - 1) // tm
    m_pad = n_mt * tm

    x_w = (n_mt + 1) * tm                          # halo reads stay in bounds
    xf = jnp.pad(xf, ((0, 0), (0, x_w - m_virt))).astype(jnp.bfloat16)

    # Validity mask over the virtual stride-1 grid: 1.0 for real conv outputs
    # (only those enter the BN batch statistics).
    cols = jnp.arange(m_pad, dtype=jnp.int32)
    rem = cols % (hp * wp)
    r, c = rem // wp, rem % wp
    valid = ((cols < m_virt)
             & (r % stride == 0) & (r // stride < oh)
             & (c % stride == 0) & (c // stride < ow))
    mask = valid.astype(jnp.float32).reshape(1, m_pad)

    # ---- Pallas: implicit-im2col conv GEMM + masked BN partial sums ----------
    def conv_stats_kernel(w_ref, x0_ref, x1_ref, m_ref, y_ref, s_ref, ss_ref):
        xw = jnp.concatenate([x0_ref[...], x1_ref[...]], axis=1)  # (Cin_p, tm+halo_p)
        acc = jnp.zeros((cout, tm), jnp.float32)
        for ki in range(kh):
            for kj in range(kw):
                sh = ki * wp + kj                                 # static shift
                acc = acc + jnp.dot(w_ref[ki * kw + kj], xw[:, sh:sh + tm],
                                    preferred_element_type=jnp.float32)
        y_ref[...] = acc.astype(y_ref.dtype)                      # bf16 y tile
        am = acc * m_ref[...]                    # zero out padded/garbage cols
        s_ref[...] = jnp.sum(am, axis=1, keepdims=True)[None]     # (1, Cout, 1)
        ss_ref[...] = jnp.sum(am * am, axis=1, keepdims=True)[None]

    y_pad, s_part, ss_part = pl.pallas_call(
        conv_stats_kernel,
        out_shape=(jax.ShapeDtypeStruct((cout, m_pad), jnp.bfloat16),
                   jax.ShapeDtypeStruct((n_mt, cout, 1), jnp.float32),
                   jax.ShapeDtypeStruct((n_mt, cout, 1), jnp.float32)),
        grid=(n_mt,),
        in_specs=[
            pl.BlockSpec((khkw, cout, cin_p), lambda i: (0, 0, 0)),   # weights
            pl.BlockSpec((cin_p, tm), lambda i: (0, i)),              # X tile
            pl.BlockSpec((cin_p, halo_p),
                         lambda i: (0, (i + 1) * halo_blocks)),       # halo
            pl.BlockSpec((1, tm), lambda i: (0, i)),                  # validity
        ],
        out_specs=(
            pl.BlockSpec((cout, tm), lambda i: (0, i)),               # y (bf16)
            pl.BlockSpec((1, cout, 1), lambda i: (i, 0, 0)),          # sum
            pl.BlockSpec((1, cout, 1), lambda i: (i, 0, 0)),          # sum of sq
        ),
        compiler_params=pltpu.CompilerParams(
            dimension_semantics=("parallel",),  # per-tile partials => shardable
            vmem_limit_bytes=32 * 1024 * 1024),
        cost_estimate=pl.CostEstimate(
            flops=2 * cout * cin_p * khkw * m_pad,
            transcendentals=0,
            bytes_accessed=(2 * cin_p * (m_pad + n_mt * halo_p)
                            + 4 * m_pad + 2 * cout * m_pad + 8 * cout * n_mt)),
    )(w_all, xf, xf, mask)

    # ---- tiny f32 step: reduce partials -> per-channel BN scale & shift ------
    m_true = float(n * oh * ow)
    s_tot = jnp.sum(s_part[:, :, 0], axis=0)                      # (Cout,)
    ss_tot = jnp.sum(ss_part[:, :, 0], axis=0)
    mean = s_tot / m_true
    # NOTE: E[x^2]-E[x]^2 in f32 is cancellation-prone if |mean| >> std; fine at
    # the current tolerance (switch to a Welford-style combine if it tightens).
    var = jnp.maximum(ss_tot / m_true - mean * mean, 0.0)
    inv_std = jax.lax.rsqrt(var + eps)
    scale = gamma.astype(jnp.float32) * inv_std
    shift = beta.astype(jnp.float32) - mean * scale

    # ---- epilogue: y*scale + shift, ReLU, crop, NCHW — one fused XLA pass ----
    # Left to XLA on purpose (perf review): fusing the affine+ReLU into the
    # crop/transpose reads y (bf16) once and writes the NCHW f32 output once.
    yv = y_pad[:, :m_virt].reshape(cout, n, hp, wp)
    yv = yv[:, :, 0:(oh - 1) * stride + 1:stride,
            0:(ow - 1) * stride + 1:stride].astype(jnp.float32)   # (Cout,N,OH,OW)
    out = jnp.maximum(yv * scale[:, None, None, None]
                      + shift[:, None, None, None], 0.0)
    return jnp.transpose(out, (1, 0, 2, 3))


# ---------------------------------------------------------------------------
# Pure-JAX f32 reference (faithful to the torch module's forward)
# ---------------------------------------------------------------------------
def bn_conv_relu_ref(x, weight, bias, gamma, beta, *,
                     stride=1, padding=0, shuffle_groups=1, eps=1e-5):
    if shuffle_groups > 1:
        x = channel_shuffle(x, shuffle_groups)
    y = jax.lax.conv_general_dilated(
        x, weight, window_strides=(stride, stride),
        padding=[(padding, padding), (padding, padding)],
        dimension_numbers=("NCHW", "OIHW", "NCHW"))
    y = y + bias.reshape(1, -1, 1, 1)
    mean = jnp.mean(y, axis=(0, 2, 3), keepdims=True)
    var = jnp.mean((y - mean) ** 2, axis=(0, 2, 3), keepdims=True)  # biased
    yhat = (y - mean) * jax.lax.rsqrt(var + eps)
    yhat = yhat * gamma.reshape(1, -1, 1, 1) + beta.reshape(1, -1, 1, 1)
    return jnp.maximum(yhat, 0.0)


if __name__ == "__main__":
    # Module config: bn_conv_relu(4, 8, kernel_size=3, stride=1, padding=1,
    #                             groups=1, shuffle_groups=2)
    N, CIN, H, W = 2, 4, 16, 16
    COUT, KH, KW = 8, 3, 3
    STRIDE, PAD, SHUFFLE = 1, 1, 2

    key = jax.random.PRNGKey(0)
    kx, kw_, kb, kg, kbe = jax.random.split(key, 5)
    x = jax.random.normal(kx, (N, CIN, H, W), dtype=jnp.float32)
    weight = 0.1 * jax.random.normal(kw_, (COUT, CIN, KH, KW), dtype=jnp.float32)
    bias = 0.1 * jax.random.normal(kb, (COUT,), dtype=jnp.float32)
    gamma = 1.0 + 0.1 * jax.random.normal(kg, (COUT,), dtype=jnp.float32)
    beta = 0.1 * jax.random.normal(kbe, (COUT,), dtype=jnp.float32)

    out = bn_conv_relu_pallas(x, weight, bias, gamma, beta,
                              stride=STRIDE, padding=PAD, shuffle_groups=SHUFFLE)
    out = jax.block_until_ready(out)

    ref = bn_conv_relu_ref(x, weight, bias, gamma, beta,
                           stride=STRIDE, padding=PAD, shuffle_groups=SHUFFLE)
    ref = jax.block_until_ready(ref)

    assert out.shape == (N, COUT, H, W), out.shape
    # Tolerance accounts for the bf16 MXU operands and bf16 y intermediate
    # (f32 accumulation / f32 BN stats); structural bugs give O(1) errors.
    err = float(jnp.max(jnp.abs(out - ref)))
    assert jnp.allclose(out, ref, atol=5e-2, rtol=5e-2), err

    print("KERNEL_OK")
</pallas_src>

<mosaic_0001>
module attributes {stable_mosaic.version = 11 : i64} {
  func.func @conv_stats_kernel(%arg0: i32, %arg1: memref<9x8x8xbf16, #tpu.memory_space<vmem>>, %arg2: memref<8x768xbf16, #tpu.memory_space<vmem>>, %arg3: memref<8x128xbf16, #tpu.memory_space<vmem>>, %arg4: memref<1x768xf32, #tpu.memory_space<vmem>>, %arg5: memref<8x768xbf16, #tpu.memory_space<vmem>>, %arg6: memref<1x8x1xf32, #tpu.memory_space<vmem>>, %arg7: memref<1x8x1xf32, #tpu.memory_space<vmem>>) attributes {dimension_semantics = [#tpu.dimension_semantics<parallel>], iteration_bounds = array<i64: 1>, scalar_prefetch = 0 : i64, scratch_operands = 0 : i64, tpu.core_type = #tpu.core_type<tc>, window_params = [{pipeline_mode = #tpu.pipeline_mode<synchronous>, transform_indices = @transform_0, window_bounds = array<i64: 9, 8, 8>}, {transform_indices = @transform_1, window_bounds = array<i64: 8, 768>}, {transform_indices = @transform_2, window_bounds = array<i64: 8, 128>}, {transform_indices = @transform_3, window_bounds = array<i64: 1, 768>}, {transform_indices = @transform_4, window_bounds = array<i64: 8, 768>}, {transform_indices = @transform_5, window_bounds = array<i64: 1, 8, 1>}, {transform_indices = @transform_6, window_bounds = array<i64: 1, 8, 1>}]} {
    %c0 = arith.constant 0 : index
    %c0_0 = arith.constant 0 : index
    %0 = vector.load %arg2[%c0, %c0_0] : memref<8x768xbf16, #tpu.memory_space<vmem>>, vector<8x768xbf16>
    %c0_1 = arith.constant 0 : index
    %c0_2 = arith.constant 0 : index
    %1 = vector.load %arg3[%c0_1, %c0_2] : memref<8x128xbf16, #tpu.memory_space<vmem>>, vector<8x128xbf16>
    %2 = tpu.concatenate %0, %1 in 1 : vector<8x768xbf16>, vector<8x128xbf16> -> vector<8x896xbf16>
    %cst = arith.constant 0.000000e+00 : f32
    %3 = vector.broadcast %cst : f32 to vector<8x768xf32>
    %c0_3 = arith.constant 0 : index
    %c0_4 = arith.constant 0 : index
    %c0_5 = arith.constant 0 : index
    %4 = vector.load %arg1[%c0_3, %c0_4, %c0_5] : memref<9x8x8xbf16, #tpu.memory_space<vmem>>, vector<1x8x8xbf16>
    %5 = vector.shape_cast %4 : vector<1x8x8xbf16> to vector<8x8xbf16>
    %6 = vector.extract_strided_slice %2 {offsets = [0, 0], sizes = [8, 768], strides = [1, 1]} : vector<8x896xbf16> to vector<8x768xbf16>
    %cst_6 = arith.constant dense<0.000000e+00> : vector<8x768xf32>
    %7 = tpu.matmul %5, %6, %cst_6 {dimension_numbers = #tpu.dot_dimension_numbers<[1], [0], [0], [1], [0, 0, 1, 1], [], []>} : vector<8x8xbf16>, vector<8x768xbf16>, vector<8x768xf32> -> vector<8x768xf32>
    %8 = arith.addf %3, %7 : vector<8x768xf32>
    %c1 = arith.constant 1 : index
    %c0_7 = arith.constant 0 : index
    %c0_8 = arith.constant 0 : index
    %9 = vector.load %arg1[%c1, %c0_7, %c0_8] : memref<9x8x8xbf16, #tpu.memory_space<vmem>>, vector<1x8x8xbf16>
    %10 = vector.shape_cast %9 : vector<1x8x8xbf16> to vector<8x8xbf16>
    %11 = vector.extract_strided_slice %2 {offsets = [0, 1], sizes = [8, 768], strides = [1, 1]} : vector<8x896xbf16> to vector<8x768xbf16>
    %cst_9 = arith.constant dense<0.000000e+00> : vector<8x768xf32>
    %12 = tpu.matmul %10, %11, %cst_9 {dimension_numbers = #tpu.dot_dimension_numbers<[1], [0], [0], [1], [0, 0, 1, 1], [], []>} : vector<8x8xbf16>, vector<8x768xbf16>, vector<8x768xf32> -> vector<8x768xf32>
    %13 = arith.addf %8, %12 : vector<8x768xf32>
    %c2 = arith.constant 2 : index
    %c0_10 = arith.constant 0 : index
    %c0_11 = arith.constant 0 : index
    %14 = vector.load %arg1[%c2, %c0_10, %c0_11] : memref<9x8x8xbf16, #tpu.memory_space<vmem>>, vector<1x8x8xbf16>
    %15 = vector.shape_cast %14 : vector<1x8x8xbf16> to vector<8x8xbf16>
    %16 = vector.extract_strided_slice %2 {offsets = [0, 2], sizes = [8, 768], strides = [1, 1]} : vector<8x896xbf16> to vector<8x768xbf16>
    %cst_12 = arith.constant dense<0.000000e+00> : vector<8x768xf32>
    %17 = tpu.matmul %15, %16, %cst_12 {dimension_numbers = #tpu.dot_dimension_numbers<[1], [0], [0], [1], [0, 0, 1, 1], [], []>} : vector<8x8xbf16>, vector<8x768xbf16>, vector<8x768xf32> -> vector<8x768xf32>
    %18 = arith.addf %13, %17 : vector<8x768xf32>
    %c3 = arith.constant 3 : index
    %c0_13 = arith.constant 0 : index
    %c0_14 = arith.constant 0 : index
    %19 = vector.load %arg1[%c3, %c0_13, %c0_14] : memref<9x8x8xbf16, #tpu.memory_space<vmem>>, vector<1x8x8xbf16>
    %20 = vector.shape_cast %19 : vector<1x8x8xbf16> to vector<8x8xbf16>
    %21 = vector.extract_strided_slice %2 {offsets = [0, 18], sizes = [8, 768], strides = [1, 1]} : vector<8x896xbf16> to vector<8x768xbf16>
    %cst_15 = arith.constant dense<0.000000e+00> : vector<8x768xf32>
    %22 = tpu.matmul %20, %21, %cst_15 {dimension_numbers = #tpu.dot_dimension_numbers<[1], [0], [0], [1], [0, 0, 1, 1], [], []>} : vector<8x8xbf16>, vector<8x768xbf16>, vector<8x768xf32> -> vector<8x768xf32>
    %23 = arith.addf %18, %22 : vector<8x768xf32>
    %c4 = arith.constant 4 : index
    %c0_16 = arith.constant 0 : index
    %c0_17 = arith.constant 0 : index
    %24 = vector.load %arg1[%c4, %c0_16, %c0_17] : memref<9x8x8xbf16, #tpu.memory_space<vmem>>, vector<1x8x8xbf16>
    %25 = vector.shape_cast %24 : vector<1x8x8xbf16> to vector<8x8xbf16>
    %26 = vector.extract_strided_slice %2 {offsets = [0, 19], sizes = [8, 768], strides = [1, 1]} : vector<8x896xbf16> to vector<8x768xbf16>
    %cst_18 = arith.constant dense<0.000000e+00> : vector<8x768xf32>
    %27 = tpu.matmul %25, %26, %cst_18 {dimension_numbers = #tpu.dot_dimension_numbers<[1], [0], [0], [1], [0, 0, 1, 1], [], []>} : vector<8x8xbf16>, vector<8x768xbf16>, vector<8x768xf32> -> vector<8x768xf32>
    %28 = arith.addf %23, %27 : vector<8x768xf32>
    %c5 = arith.constant 5 : index
    %c0_19 = arith.constant 0 : index
    %c0_20 = arith.constant 0 : index
    %29 = vector.load %arg1[%c5, %c0_19, %c0_20] : memref<9x8x8xbf16, #tpu.memory_space<vmem>>, vector<1x8x8xbf16>
    %30 = vector.shape_cast %29 : vector<1x8x8xbf16> to vector<8x8xbf16>
    %31 = vector.extract_strided_slice %2 {offsets = [0, 20], sizes = [8, 768], strides = [1, 1]} : vector<8x896xbf16> to vector<8x768xbf16>
    %cst_21 = arith.constant dense<0.000000e+00> : vector<8x768xf32>
    %32 = tpu.matmul %30, %31, %cst_21 {dimension_numbers = #tpu.dot_dimension_numbers<[1], [0], [0], [1], [0, 0, 1, 1], [], []>} : vector<8x8xbf16>, vector<8x768xbf16>, vector<8x768xf32> -> vector<8x768xf32>
    %33 = arith.addf %28, %32 : vector<8x768xf32>
    %c6 = arith.constant 6 : index
    %c0_22 = arith.constant 0 : index
    %c0_23 = arith.constant 0 : index
    %34 = vector.load %arg1[%c6, %c0_22, %c0_23] : memref<9x8x8xbf16, #tpu.memory_space<vmem>>, vector<1x8x8xbf16>
    %35 = vector.shape_cast %34 : vector<1x8x8xbf16> to vector<8x8xbf16>
    %36 = vector.extract_strided_slice %2 {offsets = [0, 36], sizes = [8, 768], strides = [1, 1]} : vector<8x896xbf16> to vector<8x768xbf16>
    %cst_24 = arith.constant dense<0.000000e+00> : vector<8x768xf32>
    %37 = tpu.matmul %35, %36, %cst_24 {dimension_numbers = #tpu.dot_dimension_numbers<[1], [0], [0], [1], [0, 0, 1, 1], [], []>} : vector<8x8xbf16>, vector<8x768xbf16>, vector<8x768xf32> -> vector<8x768xf32>
    %38 = arith.addf %33, %37 : vector<8x768xf32>
    %c7 = arith.constant 7 : index
    %c0_25 = arith.constant 0 : index
    %c0_26 = arith.constant 0 : index
    %39 = vector.load %arg1[%c7, %c0_25, %c0_26] : memref<9x8x8xbf16, #tpu.memory_space<vmem>>, vector<1x8x8xbf16>
    %40 = vector.shape_cast %39 : vector<1x8x8xbf16> to vector<8x8xbf16>
    %41 = vector.extract_strided_slice %2 {offsets = [0, 37], sizes = [8, 768], strides = [1, 1]} : vector<8x896xbf16> to vector<8x768xbf16>
    %cst_27 = arith.constant dense<0.000000e+00> : vector<8x768xf32>
    %42 = tpu.matmul %40, %41, %cst_27 {dimension_numbers = #tpu.dot_dimension_numbers<[1], [0], [0], [1], [0, 0, 1, 1], [], []>} : vector<8x8xbf16>, vector<8x768xbf16>, vector<8x768xf32> -> vector<8x768xf32>
    %43 = arith.addf %38, %42 : vector<8x768xf32>
    %c8 = arith.constant 8 : index
    %c0_28 = arith.constant 0 : index
    %c0_29 = arith.constant 0 : index
    %44 = vector.load %arg1[%c8, %c0_28, %c0_29] : memref<9x8x8xbf16, #tpu.memory_space<vmem>>, vector<1x8x8xbf16>
    %45 = vector.shape_cast %44 : vector<1x8x8xbf16> to vector<8x8xbf16>
    %46 = vector.extract_strided_slice %2 {offsets = [0, 38], sizes = [8, 768], strides = [1, 1]} : vector<8x896xbf16> to vector<8x768xbf16>
    %cst_30 = arith.constant dense<0.000000e+00> : vector<8x768xf32>
    %47 = tpu.matmul %45, %46, %cst_30 {dimension_numbers = #tpu.dot_dimension_numbers<[1], [0], [0], [1], [0, 0, 1, 1], [], []>} : vector<8x8xbf16>, vector<8x768xbf16>, vector<8x768xf32> -> vector<8x768xf32>
    %48 = arith.addf %43, %47 : vector<8x768xf32>
    %49 = arith.truncf %48 : vector<8x768xf32> to vector<8x768xbf16>
    %c0_31 = arith.constant 0 : index
    %c0_32 = arith.constant 0 : index
    %50 = vector.load %arg5[%c0_31, %c0_32] : memref<8x768xbf16, #tpu.memory_space<vmem>>, vector<8x768xbf16>
    tpu.vector_store %arg5[%c0_31, %c0_32], %49 {strides = array<i32>} : memref<8x768xbf16, #tpu.memory_space<vmem>>, vector<8x768xbf16>,
    %c0_33 = arith.constant 0 : index
    %c0_34 = arith.constant 0 : index
    %51 = vector.load %arg4[%c0_33, %c0_34] : memref<1x768xf32, #tpu.memory_space<vmem>>, vector<1x768xf32>
    %52 = vector.broadcast %51 : vector<1x768xf32> to vector<8x768xf32>
    %53 = arith.mulf %48, %52 : vector<8x768xf32>
    %cst_35 = arith.constant dense<0.000000e+00> : vector<8xf32>
    %54 = vector.multi_reduction <add>, %53, %cst_35 [1] : vector<8x768xf32> to vector<8xf32>
    %55 = vector.shape_cast %54 : vector<8xf32> to vector<8x1xf32>
    %56 = vector.shape_cast %55 : vector<8x1xf32> to vector<1x8x1xf32>
    %c0_36 = arith.constant 0 : index
    %c0_37 = arith.constant 0 : index
    %c0_38 = arith.constant 0 : index
    %57 = vector.load %arg6[%c0_36, %c0_37, %c0_38] : memref<1x8x1xf32, #tpu.memory_space<vmem>>, vector<1x8x1xf32>
    tpu.vector_store %arg6[%c0_36, %c0_37, %c0_38], %56 {strides = array<i32>} : memref<1x8x1xf32, #tpu.memory_space<vmem>>, vector<1x8x1xf32>,
    %58 = arith.mulf %53, %53 : vector<8x768xf32>
    %cst_39 = arith.constant dense<0.000000e+00> : vector<8xf32>
    %59 = vector.multi_reduction <add>, %58, %cst_39 [1] : vector<8x768xf32> to vector<8xf32>
    %60 = vector.shape_cast %59 : vector<8xf32> to vector<8x1xf32>
    %61 = vector.shape_cast %60 : vector<8x1xf32> to vector<1x8x1xf32>
    %c0_40 = arith.constant 0 : index
    %c0_41 = arith.constant 0 : index
    %c0_42 = arith.constant 0 : index
    %62 = vector.load %arg7[%c0_40, %c0_41, %c0_42] : memref<1x8x1xf32, #tpu.memory_space<vmem>>, vector<1x8x1xf32>
    tpu.vector_store %arg7[%c0_40, %c0_41, %c0_42], %61 {strides = array<i32>} : memref<1x8x1xf32, #tpu.memory_space<vmem>>, vector<1x8x1xf32>,
    return
  }
  func.func @transform_0(%arg0: i32) -> (i32, i32, i32) {
    %c0_i32 = arith.constant 0 : i32
    %c0_i32_0 = arith.constant 0 : i32
    %c0_i32_1 = arith.constant 0 : i32
    %c0_i32_2 = arith.constant 0 : i32
    return %c0_i32, %c0_i32_0, %c0_i32_1 : i32, i32, i32
  }
  func.func @transform_1(%arg0: i32) -> (i32, i32) {
    %c0_i32 = arith.constant 0 : i32
    %c0_i32_0 = arith.constant 0 : i32
    return %c0_i32, %arg0 : i32, i32
  }
  func.func @transform_2(%arg0: i32) -> (i32, i32) {
    %c1_i32 = arith.constant 1 : i32
    %0 = arith.addi %arg0, %c1_i32 : i32
    %c6_i32 = arith.constant 6 : i32
    %1 = arith.muli %0, %c6_i32 : i32
    %c0_i32 = arith.constant 0 : i32
    %c0_i32_0 = arith.constant 0 : i32
    return %c0_i32, %1 : i32, i32
  }
  func.func @transform_3(%arg0: i32) -> (i32, i32) {
    %c0_i32 = arith.constant 0 : i32
    %c0_i32_0 = arith.constant 0 : i32
    return %c0_i32, %arg0 : i32, i32
  }
  func.func @transform_4(%arg0: i32) -> (i32, i32) {
    %c0_i32 = arith.constant 0 : i32
    %c0_i32_0 = arith.constant 0 : i32
    return %c0_i32, %arg0 : i32, i32
  }
  func.func @transform_5(%arg0: i32) -> (i32, i32, i32) {
    %c0_i32 = arith.constant 0 : i32
    %c0_i32_0 = arith.constant 0 : i32
    %c0_i32_1 = arith.constant 0 : i32
    return %arg0, %c0_i32, %c0_i32_0 : i32, i32, i32
  }
  func.func @transform_6(%arg0: i32) -> (i32, i32, i32) {
    %c0_i32 = arith.constant 0 : i32
    %c0_i32_0 = arith.constant 0 : i32
    %c0_i32_1 = arith.constant 0 : i32
    return %arg0, %c0_i32, %c0_i32_0 : i32, i32, i32
  }
}

</mosaic_0001>

<llo_original>
// kernel: tpu_custom_call.1
$region0: #{tpu_custom_call.1}
  #allocation0 [shape = 'u32[]', space=smem, size = 0x4, offset = 0x4, fixed_abs, tag = 'smem constant byte address 0x4 - core index']
  #allocation1 [shape = 'u32[144,128]{1,0:T(1,128)}', space=vmem, size = 0x12000, scoped, tag = 'internal scratch']
  %s0 = inlined_call_operand.vmem [shape: bf16[9,8,8], index: 0, kind: input, shape index: {}]
  %s1 = inlined_call_operand.vmem [shape: bf16[8,1536], index: 1, kind: input, shape index: {}]
  %s2 = inlined_call_operand.hbm [shape: bf16[8,1536], index: 2, kind: input, shape index: {}]
  %s3 = inlined_call_operand.vmem [shape: f32[1,768], index: 3, kind: input, shape index: {}]
  %s4 = inlined_call_operand.hbm [shape: bf16[8,768], index: 4, kind: output, shape index: {0}]
  %s5 = inlined_call_operand.vmem [shape: f32[1,8,1], index: 5, kind: output, shape index: {1}]
  %s6 = inlined_call_operand.vmem [shape: f32[1,8,1], index: 6, kind: output, shape index: {2}]
  %7 = xla_tuple %s4, %s5, %s6
  %s8 = sld [smem:[#allocation0]]
  $region46: #{tpu_custom_call.1} parent=0
    _
  %s10 = ssub.s32 1, %s8
  %s11 = scalar_select 0, %s10, %s8
  $region1: #{tpu_custom_call.1} parent=0
    #allocation2 [shape = 'u8[2048]{0}', space=vmem, size = 0x800, scoped, tag = 'input window, operand 2, single buffered']
    #allocation3 [shape = 's32[1]{0}', space=sflag, size = 0x4, scoped, tag = 'scoped memory for tpu_custom_call.1']
    #allocation4 [shape = 's32[1]{0}', space=sflag, size = 0x4, scoped, tag = 'scoped memory for tpu_custom_call.1']
    #allocation5 [shape = 'u8[12288]{0}', space=vmem, size = 0x3000, scoped, tag = 'output window, operand 0, single buffered']
    %12 = vsyncpa [#allocation3], 0
    %13 = vsyncpa [#allocation4], 0
    // Predicated region
    $region2: #{tpu_custom_call.1} parent=1 // pred_check
      _
    $region3: #{tpu_custom_call.1} parent=1 // pred_check_branch
      %15 = sbr.rel (0) target = $region5
    $region4: #{tpu_custom_call.1} parent=1 // pred_region
      _
    $region5: #{tpu_custom_call.1} parent=1 // pred_fallthru
      _
    // Predicated region
    $region6: #{tpu_custom_call.1} parent=1 // pred_check
      _
    $region7: #{tpu_custom_call.1} parent=1 // pred_check_branch
      %17 = sbr.rel (0) target = $region9
    $region8: #{tpu_custom_call.1} parent=1 // pred_region
      _
    $region9: #{tpu_custom_call.1} parent=1 // pred_fallthru
      _
    // Predicated region
    $region10: #{tpu_custom_call.1} parent=1 // pred_check
      _
    $region11: #{tpu_custom_call.1} parent=1 // pred_check_branch
      %19 = sbr.rel (0) target = $region13
    $region12: #{tpu_custom_call.1} parent=1 // pred_region
      %s20 = sadd.s32 0, 1
      %s21 = smul.u32 %s20, 6
      %s23 = ssub.s32 64, 64
      %24 = vsyncadd [#allocation3], %s23
      %s25 = smul.addr %s21, 64
      %s26 = scalar_lea.hbm %s2, %s25
      %s28 = sshll.u32 [#allocation2], 4
      %s29 = int_to_ptr.vmem [resolvable:$true] %s28
      %31 = dma.hbm_to_vmem [thread:$0]  %s26, 64, %s29, [#allocation3]
    $region13: #{tpu_custom_call.1} parent=1 // pred_fallthru
      _
    // Predicated region
    $region14: #{tpu_custom_call.1} parent=1 // pred_check
      _
    $region15: #{tpu_custom_call.1} parent=1 // pred_check_branch
      %33 = sbr.rel (0) target = $region17
    $region16: #{tpu_custom_call.1} parent=1 // pred_region
      _
    $region17: #{tpu_custom_call.1} parent=1 // pred_fallthru
      _
    // Predicated region
    $region18: #{tpu_custom_call.1} parent=1 // pred_check
      _
    $region19: #{tpu_custom_call.1} parent=1 // pred_check_branch
      %35 = sbr.rel (0) target = $region21
    $region20: #{tpu_custom_call.1} parent=1 // pred_region
      %36 = dma.done [#allocation3], 64
    $region21: #{tpu_custom_call.1} parent=1 // pred_fallthru
      _
    %s37 = sadd.s32 0, 1
    %s38 = smul.u32 %s37, 6
    %v40 = vld [vmem:[%s1] sm:$0xff]
    %v41 = vld [vmem:[%s1 + $0x8] sm:$0xff]
    %v42 = vld [vmem:[%s1 + $0x10] sm:$0xff]
    %v43 = vld [vmem:[#allocation2] sm:$0xf]
    %v47 = vunpack.c.l.b16 %v40
    %v48 = vunpack.c.h.b16 %v40
    %v49 = vunpack.c.l.b16 %v41
    %v50 = vunpack.c.h.b16 %v41
    %v51 = vunpack.c.l.b16 %v42
    %v52 = vunpack.c.h.b16 %v42
    %v53 = vpack.c.b16 %v47, %v47
    %v54 = vpack.c.b16 %v48, %v48
    %v55 = vpack.c.b16 %v49, %v49
    %v56 = vpack.c.b16 %v50, %v50
    %v57 = vpack.c.b16 %v51, %v51
    %v58 = vpack.c.b16 %v52, %v52
    %v59 = vld [vmem:[%s0] sm:$0xf]
    %s60 = scalar_lea.vmem %s0, 4
    %v61 = vld [vmem:[%s60] sm:$0xf]
    %63 = vrot.lane.b32.xlu0 %v53, 127
    %v64 = vpop.permute.xlu0 %63
    %65 = vrot.lane.b32.xlu0 %v54, 127
    %v66 = vpop.permute.xlu0 %65
    %67 = vrot.lane.b32.xlu0 %v55, 127
    %v68 = vpop.permute.xlu0 %67
    %69 = vrot.lane.b32.xlu0 %v56, 127
    %v70 = vpop.permute.xlu0 %69
    %71 = vrot.lane.b32.xlu0 %v57, 127
    %v72 = vpop.permute.xlu0 %71
    %73 = vrot.lane.b32.xlu0 %v58, 127
    %v74 = vpop.permute.xlu0 %73
    %75 = vrot.lane.b32.xlu0 %v43, 127
    %v76 = vpop.permute.xlu0 %75
    %vm77 = vcmask 1039360
    %v78 = vsel %vm77, %v64, %v66
    %v79 = vsel %vm77, %v66, %v68
    %v80 = vsel %vm77, %v68, %v70
    %v81 = vsel %vm77, %v70, %v72
    %v82 = vsel %vm77, %v72, %v74
    %v83 = vsel %vm77, %v74, %v76
    %vm84 = vcmask 64512
    %v86 = vsel %vm84, %v61, 0
    %vm88 = vcmask 1043456
    %v90 = vsel %vm88, %v78, 0
    %v93 = vsel %vm88, %v79, 0
    %v96 = vsel %vm88, %v80, 0
    %v99 = vsel %vm88, %v81, 0
    %v102 = vsel %vm88, %v82, 0
    %v105 = vsel %vm88, %v83, 0
    %107 = vmatprep.subr.bf16.mxu0 %v93
    %108 = vmatpush1.bf16.msra.mxu0 %v90
    %109 = vmatprep.subr.bf16.mxu0 0
    %110 = vmatpush1.bf16.msra.mxu0 0
    %111 = vmatprep.subr.bf16.mxu0 0
    %112 = vmatpush1.bf16.msra.mxu0 0
    %113 = vmatprep.subr.bf16.mxu0 0
    %114 = vmatpush1.bf16.msra.mxu0 0
    %115 = vmatprep.subr.bf16.mxu0 0
    %116 = vmatpush1.bf16.msra.mxu0 0
    %117 = vmatprep.subr.bf16.mxu0 0
    %118 = vmatpush1.bf16.msra.mxu0 0
    %119 = vmatprep.subr.bf16.mxu0 0
    %120 = vmatpush1.bf16.msra.mxu0 0
    %121 = vmatprep.subr.bf16.mxu0 0
    %122 = vmatpush1.bf16.msra.mxu0 0
    %123 = vmatprep.subr.bf16.mxu0 0
    %124 = vmatpush1.bf16.msra.mxu0 0
    %125 = vmatprep.subr.bf16.mxu0 0
    %126 = vmatpush1.bf16.msra.mxu0 0
    %127 = vmatprep.subr.bf16.mxu0 0
    %128 = vmatpush1.bf16.msra.mxu0 0
    %129 = vmatprep.subr.bf16.mxu0 0
    %130 = vmatpush1.bf16.msra.mxu0 0
    %131 = vmatprep.subr.bf16.mxu0 0
    %132 = vmatpush1.bf16.msra.mxu0 0
    %133 = vmatprep.subr.bf16.mxu0 0
    %134 = vmatpush1.bf16.msra.mxu0 0
    %135 = vmatprep.subr.bf16.mxu0 0
    %136 = vmatpush1.bf16.msra.mxu0 0
    %137 = vmatprep.subr.bf16.mxu0 0
    %138 = vmatpush1.bf16.msra.mxu0 0
    %139 = vmatprep.mubr.bf16.mxu0 0
    %140 = vmatmul.mubr.bf16.gmra.mrb[0].mxu0 %v86
    %v141 = vpop.f32.mrb[0].mxu0
    %v142 = vadd.f32 0.0, %v141
    %v143 = vpop.f32.mrb[0].mxu0
    %v144 = vadd.f32 0.0, %v143
    %v145 = vpop.f32.mrb[0].mxu0
    %v146 = vpop.f32.mrb[0].mxu0
    %147 = vdwg.mxu0
    %148 = vmatprep.subr.bf16.mxu0 %v99
    %149 = vmatpush1.bf16.msra.mxu0 %v96
    %150 = vmatprep.subr.bf16.mxu0 0
    %151 = vmatpush1.bf16.msra.mxu0 0
    %152 = vmatprep.subr.bf16.mxu0 0
    %153 = vmatpush1.bf16.msra.mxu0 0
    %154 = vmatprep.subr.bf16.mxu0 0
    %155 = vmatpush1.bf16.msra.mxu0 0
    %156 = vmatprep.subr.bf16.mxu0 0
    %157 = vmatpush1.bf16.msra.mxu0 0
    %158 = vmatprep.subr.bf16.mxu0 0
    %159 = vmatpush1.bf16.msra.mxu0 0
    %160 = vmatprep.subr.bf16.mxu0 0
    %161 = vmatpush1.bf16.msra.mxu0 0
    %162 = vmatprep.subr.bf16.mxu0 0
    %163 = vmatpush1.bf16.msra.mxu0 0
    %164 = vmatprep.subr.bf16.mxu0 0
    %165 = vmatpush1.bf16.msra.mxu0 0
    %166 = vmatprep.subr.bf16.mxu0 0
    %167 = vmatpush1.bf16.msra.mxu0 0
    %168 = vmatprep.subr.bf16.mxu0 0
    %169 = vmatpush1.bf16.msra.mxu0 0
    %170 = vmatprep.subr.bf16.mxu0 0
    %171 = vmatpush1.bf16.msra.mxu0 0
    %172 = vmatprep.subr.bf16.mxu0 0
    %173 = vmatpush1.bf16.msra.mxu0 0
    %174 = vmatprep.subr.bf16.mxu0 0
    %175 = vmatpush1.bf16.msra.mxu0 0
    %176 = vmatprep.subr.bf16.mxu0 0
    %177 = vmatpush1.bf16.msra.mxu0 0
    %178 = vmatprep.subr.bf16.mxu0 0
    %179 = vmatpush1.bf16.msra.mxu0 0
    %180 = vmatprep.mubr.bf16.mxu0 0
    %181 = vmatmul.mubr.bf16.gmra.mrb[0].mxu0 %v86
    %v182 = vpop.f32.mrb[0].mxu0
    %v183 = vadd.f32 0.0, %v182
    %v184 = vpop.f32.mrb[0].mxu0
    %v185 = vadd.f32 0.0, %v184
    %v186 = vpop.f32.mrb[0].mxu0
    %v187 = vpop.f32.mrb[0].mxu0
    %188 = vdwg.mxu0
    %189 = vmatprep.subr.bf16.mxu0 %v105
    %190 = vmatpush1.bf16.msra.mxu0 %v102
    %191 = vmatprep.subr.bf16.mxu0 0
    %192 = vmatpush1.bf16.msra.mxu0 0
    %193 = vmatprep.subr.bf16.mxu0 0
    %194 = vmatpush1.bf16.msra.mxu0 0
    %195 = vmatprep.subr.bf16.mxu0 0
    %196 = vmatpush1.bf16.msra.mxu0 0
    %197 = vmatprep.subr.bf16.mxu0 0
    %198 = vmatpush1.bf16.msra.mxu0 0
    %199 = vmatprep.subr.bf16.mxu0 0
    %200 = vmatpush1.bf16.msra.mxu0 0
    %201 = vmatprep.subr.bf16.mxu0 0
    %202 = vmatpush1.bf16.msra.mxu0 0
    %203 = vmatprep.subr.bf16.mxu0 0
    %204 = vmatpush1.bf16.msra.mxu0 0
    %205 = vmatprep.subr.bf16.mxu0 0
    %206 = vmatpush1.bf16.msra.mxu0 0
    %207 = vmatprep.subr.bf16.mxu0 0
    %208 = vmatpush1.bf16.msra.mxu0 0
    %209 = vmatprep.subr.bf16.mxu0 0
    %210 = vmatpush1.bf16.msra.mxu0 0
    %211 = vmatprep.subr.bf16.mxu0 0
    %212 = vmatpush1.bf16.msra.mxu0 0
    %213 = vmatprep.subr.bf16.mxu0 0
    %214 = vmatpush1.bf16.msra.mxu0 0
    %215 = vmatprep.subr.bf16.mxu0 0
    %216 = vmatpush1.bf16.msra.mxu0 0
    %217 = vmatprep.subr.bf16.mxu0 0
    %218 = vmatpush1.bf16.msra.mxu0 0
    %219 = vmatprep.subr.bf16.mxu0 0
    %220 = vmatpush1.bf16.msra.mxu0 0
    %221 = vmatprep.mubr.bf16.mxu0 0
    %222 = vmatmul.mubr.bf16.gmra.mrb[0].mxu0 %v86
    %v223 = vpop.f32.mrb[0].mxu0
    %v224 = vadd.f32 0.0, %v223
    %v225 = vpop.f32.mrb[0].mxu0
    %v226 = vadd.f32 0.0, %v225
    %v227 = vpop.f32.mrb[0].mxu0
    %v228 = vpop.f32.mrb[0].mxu0
    %229 = vdwg.mxu0
    %v231 = vsel %vm84, %v59, 0
    %v234 = vsel %vm88, %v53, 0
    %v237 = vsel %vm88, %v54, 0
    %v240 = vsel %vm88, %v55, 0
    %v243 = vsel %vm88, %v56, 0
    %v246 = vsel %vm88, %v57, 0
    %v249 = vsel %vm88, %v58, 0
    %251 = vmatprep.subr.bf16.mxu0 %v237
    %252 = vmatpush1.bf16.msra.mxu0 %v234
    %253 = vmatprep.subr.bf16.mxu0 0
    %254 = vmatpush1.bf16.msra.mxu0 0
    %255 = vmatprep.subr.bf16.mxu0 0
    %256 = vmatpush1.bf16.msra.mxu0 0
    %257 = vmatprep.subr.bf16.mxu0 0
    %258 = vmatpush1.bf16.msra.mxu0 0
    %259 = vmatprep.subr.bf16.mxu0 0
    %260 = vmatpush1.bf16.msra.mxu0 0
    %261 = vmatprep.subr.bf16.mxu0 0
    %262 = vmatpush1.bf16.msra.mxu0 0
    %263 = vmatprep.subr.bf16.mxu0 0
    %264 = vmatpush1.bf16.msra.mxu0 0
    %265 = vmatprep.subr.bf16.mxu0 0
    %266 = vmatpush1.bf16.msra.mxu0 0
    %267 = vmatprep.subr.bf16.mxu0 0
    %268 = vmatpush1.bf16.msra.mxu0 0
    %269 = vmatprep.subr.bf16.mxu0 0
    %270 = vmatpush1.bf16.msra.mxu0 0
    %271 = vmatprep.subr.bf16.mxu0 0
    %272 = vmatpush1.bf16.msra.mxu0 0
    %273 = vmatprep.subr.bf16.mxu0 0
    %274 = vmatpush1.bf16.msra.mxu0 0
    %275 = vmatprep.subr.bf16.mxu0 0
    %276 = vmatpush1.bf16.msra.mxu0 0
    %277 = vmatprep.subr.bf16.mxu0 0
    %278 = vmatpush1.bf16.msra.mxu0 0
    %279 = vmatprep.subr.bf16.mxu0 0
    %280 = vmatpush1.bf16.msra.mxu0 0
    %281 = vmatprep.subr.bf16.mxu0 0
    %282 = vmatpush1.bf16.msra.mxu0 0
    %283 = vmatprep.mubr.bf16.mxu0 0
    %284 = vmatmul.mubr.bf16.gmra.mrb[0].mxu0 %v231
    %v285 = vpop.f32.mrb[0].mxu0
    %v286 = vadd.f32 %v142, %v285
    %v287 = vpop.f32.mrb[0].mxu0
    %v288 = vadd.f32 %v144, %v287
    %v289 = vpop.f32.mrb[0].mxu0
    %v290 = vpop.f32.mrb[0].mxu0
    %291 = vdwg.mxu0
    %292 = vmatprep.subr.bf16.mxu0 %v243
    %293 = vmatpush1.bf16.msra.mxu0 %v240
    %294 = vmatprep.subr.bf16.mxu0 0
    %295 = vmatpush1.bf16.msra.mxu0 0
    %296 = vmatprep.subr.bf16.mxu0 0
    %297 = vmatpush1.bf16.msra.mxu0 0
    %298 = vmatprep.subr.bf16.mxu0 0
    %299 = vmatpush1.bf16.msra.mxu0 0
    %300 = vmatprep.subr.bf16.mxu0 0
    %301 = vmatpush1.bf16.msra.mxu0 0
    %302 = vmatprep.subr.bf16.mxu0 0
    %303 = vmatpush1.bf16.msra.mxu0 0
    %304 = vmatprep.subr.bf16.mxu0 0
    %305 = vmatpush1.bf16.msra.mxu0 0
    %306 = vmatprep.subr.bf16.mxu0 0
    %307 = vmatpush1.bf16.msra.mxu0 0
    %308 = vmatprep.subr.bf16.mxu0 0
    %309 = vmatpush1.bf16.msra.mxu0 0
    %310 = vmatprep.subr.bf16.mxu0 0
    %311 = vmatpush1.bf16.msra.mxu0 0
    %312 = vmatprep.subr.bf16.mxu0 0
    %313 = vmatpush1.bf16.msra.mxu0 0
    %314 = vmatprep.subr.bf16.mxu0 0
    %315 = vmatpush1.bf16.msra.mxu0 0
    %316 = vmatprep.subr.bf16.mxu0 0
    %317 = vmatpush1.bf16.msra.mxu0 0
    %318 = vmatprep.subr.bf16.mxu0 0
    %319 = vmatpush1.bf16.msra.mxu0 0
    %320 = vmatprep.subr.bf16.mxu0 0
    %321 = vmatpush1.bf16.msra.mxu0 0
    %322 = vmatprep.subr.bf16.mxu0 0
    %323 = vmatpush1.bf16.msra.mxu0 0
    %324 = vmatprep.mubr.bf16.mxu0 0
    %325 = vmatmul.mubr.bf16.gmra.mrb[0].mxu0 %v231
    %v326 = vpop.f32.mrb[0].mxu0
    %v327 = vadd.f32 %v183, %v326
    %v328 = vpop.f32.mrb[0].mxu0
    %v329 = vadd.f32 %v185, %v328
    %v330 = vpop.f32.mrb[0].mxu0
    %v331 = vpop.f32.mrb[0].mxu0
    %332 = vdwg.mxu0
    %333 = vmatprep.subr.bf16.mxu0 %v249
    %334 = vmatpush1.bf16.msra.mxu0 %v246
    %335 = vmatprep.subr.bf16.mxu0 0
    %336 = vmatpush1.bf16.msra.mxu0 0
    %337 = vmatprep.subr.bf16.mxu0 0
    %338 = vmatpush1.bf16.msra.mxu0 0
    %339 = vmatprep.subr.bf16.mxu0 0
    %340 = vmatpush1.bf16.msra.mxu0 0
    %341 = vmatprep.subr.bf16.mxu0 0
    %342 = vmatpush1.bf16.msra.mxu0 0
    %343 = vmatprep.subr.bf16.mxu0 0
    %344 = vmatpush1.bf16.msra.mxu0 0
    %345 = vmatprep.subr.bf16.mxu0 0
    %346 = vmatpush1.bf16.msra.mxu0 0
    %347 = vmatprep.subr.bf16.mxu0 0
    %348 = vmatpush1.bf16.msra.mxu0 0
    %349 = vmatprep.subr.bf16.mxu0 0
    %350 = vmatpush1.bf16.msra.mxu0 0
    %351 = vmatprep.subr.bf16.mxu0 0
    %352 = vmatpush1.bf16.msra.mxu0 0
    %353 = vmatprep.subr.bf16.mxu0 0
    %354 = vmatpush1.bf16.msra.mxu0 0
    %355 = vmatprep.subr.bf16.mxu0 0
    %356 = vmatpush1.bf16.msra.mxu0 0
    %357 = vmatprep.subr.bf16.mxu0 0
    %358 = vmatpush1.bf16.msra.mxu0 0
    %359 = vmatprep.subr.bf16.mxu0 0
    %360 = vmatpush1.bf16.msra.mxu0 0
    %361 = vmatprep.subr.bf16.mxu0 0
    %362 = vmatpush1.bf16.msra.mxu0 0
    %363 = vmatprep.subr.bf16.mxu0 0
    %364 = vmatpush1.bf16.msra.mxu0 0
    %365 = vmatprep.mubr.bf16.mxu0 0
    %366 = vmatmul.mubr.bf16.gmra.mrb[0].mxu0 %v231
    %v367 = vpop.f32.mrb[0].mxu0
    %v368 = vadd.f32 %v224, %v367
    %v369 = vpop.f32.mrb[0].mxu0
    %v370 = vadd.f32 %v226, %v369
    %v371 = vpop.f32.mrb[0].mxu0
    %v372 = vpop.f32.mrb[0].mxu0
    %373 = vdwg.mxu0
    %s374 = scalar_lea.vmem %s0, 8
    %v375 = vld [vmem:[%s374] sm:$0xf]
    %376 = vrot.lane.b32.xlu0 %v53, 126
    %v377 = vpop.permute.xlu0 %376
    %378 = vrot.lane.b32.xlu0 %v54, 126
    %v379 = vpop.permute.xlu0 %378
    %380 = vrot.lane.b32.xlu0 %v55, 126
    %v381 = vpop.permute.xlu0 %380
    %382 = vrot.lane.b32.xlu0 %v56, 126
    %v383 = vpop.permute.xlu0 %382
    %384 = vrot.lane.b32.xlu0 %v57, 126
    %v385 = vpop.permute.xlu0 %384
    %386 = vrot.lane.b32.xlu0 %v58, 126
    %v387 = vpop.permute.xlu0 %386
    %388 = vrot.lane.b32.xlu0 %v43, 126
    %v389 = vpop.permute.xlu0 %388
    %vm390 = vcmask 1031168
    %v391 = vsel %vm390, %v377, %v379
    %v392 = vsel %vm390, %v379, %v381
    %v393 = vsel %vm390, %v381, %v383
    %v394 = vsel %vm390, %v383, %v385
    %v395 = vsel %vm390, %v385, %v387
    %v396 = vsel %vm390, %v387, %v389
    %v398 = vsel %vm84, %v375, 0
    %v401 = vsel %vm88, %v391, 0
    %v404 = vsel %vm88, %v392, 0
    %v407 = vsel %vm88, %v393, 0
    %v410 = vsel %vm88, %v394, 0
    %v413 = vsel %vm88, %v395, 0
    %v416 = vsel %vm88, %v396, 0
    %418 = vmatprep.subr.bf16.mxu0 %v404
    %419 = vmatpush1.bf16.msra.mxu0 %v401
    %420 = vmatprep.subr.bf16.mxu0 0
    %421 = vmatpush1.bf16.msra.mxu0 0
    %422 = vmatprep.subr.bf16.mxu0 0
    %423 = vmatpush1.bf16.msra.mxu0 0
    %424 = vmatprep.subr.bf16.mxu0 0
    %425 = vmatpush1.bf16.msra.mxu0 0
    %426 = vmatprep.subr.bf16.mxu0 0
    %427 = vmatpush1.bf16.msra.mxu0 0
    %428 = vmatprep.subr.bf16.mxu0 0
    %429 = vmatpush1.bf16.msra.mxu0 0
    %430 = vmatprep.subr.bf16.mxu0 0
    %431 = vmatpush1.bf16.msra.mxu0 0
    %432 = vmatprep.subr.bf16.mxu0 0
    %433 = vmatpush1.bf16.msra.mxu0 0
    %434 = vmatprep.subr.bf16.mxu0 0
    %435 = vmatpush1.bf16.msra.mxu0 0
    %436 = vmatprep.subr.bf16.mxu0 0
    %437 = vmatpush1.bf16.msra.mxu0 0
    %438 = vmatprep.subr.bf16.mxu0 0
    %439 = vmatpush1.bf16.msra.mxu0 0
    %440 = vmatprep.subr.bf16.mxu0 0
    %441 = vmatpush1.bf16.msra.mxu0 0
    %442 = vmatprep.subr.bf16.mxu0 0
    %443 = vmatpush1.bf16.msra.mxu0 0
    %444 = vmatprep.subr.bf16.mxu0 0
    %445 = vmatpush1.bf16.msra.mxu0 0
    %446 = vmatprep.subr.bf16.mxu0 0
    %447 = vmatpush1.bf16.msra.mxu0 0
    %448 = vmatprep.subr.bf16.mxu0 0
    %449 = vmatpush1.bf16.msra.mxu0 0
    %450 = vmatprep.mubr.bf16.mxu0 0
    %451 = vmatmul.mubr.bf16.gmra.mrb[0].mxu0 %v398
    %v452 = vpop.f32.mrb[0].mxu0
    %v453 = vadd.f32 0.0, %v452
    %v454 = vpop.f32.mrb[0].mxu0
    %v455 = vadd.f32 0.0, %v454
    %v456 = vpop.f32.mrb[0].mxu0
    %v457 = vpop.f32.mrb[0].mxu0
    %458 = vdwg.mxu0
    %459 = vmatprep.subr.bf16.mxu0 %v410
    %460 = vmatpush1.bf16.msra.mxu0 %v407
    %461 = vmatprep.subr.bf16.mxu0 0
    %462 = vmatpush1.bf16.msra.mxu0 0
    %463 = vmatprep.subr.bf16.mxu0 0
    %464 = vmatpush1.bf16.msra.mxu0 0
    %465 = vmatprep.subr.bf16.mxu0 0
    %466 = vmatpush1.bf16.msra.mxu0 0
    %467 = vmatprep.subr.bf16.mxu0 0
    %468 = vmatpush1.bf16.msra.mxu0 0
    %469 = vmatprep.subr.bf16.mxu0 0
    %470 = vmatpush1.bf16.msra.mxu0 0
    %471 = vmatprep.subr.bf16.mxu0 0
    %472 = vmatpush1.bf16.msra.mxu0 0
    %473 = vmatprep.subr.bf16.mxu0 0
    %474 = vmatpush1.bf16.msra.mxu0 0
    %475 = vmatprep.subr.bf16.mxu0 0
    %476 = vmatpush1.bf16.msra.mxu0 0
    %477 = vmatprep.subr.bf16.mxu0 0
    %478 = vmatpush1.bf16.msra.mxu0 0
    %479 = vmatprep.subr.bf16.mxu0 0
    %480 = vmatpush1.bf16.msra.mxu0 0
    %481 = vmatprep.subr.bf16.mxu0 0
    %482 = vmatpush1.bf16.msra.mxu0 0
    %483 = vmatprep.subr.bf16.mxu0 0
    %484 = vmatpush1.bf16.msra.mxu0 0
    %485 = vmatprep.subr.bf16.mxu0 0
    %486 = vmatpush1.bf16.msra.mxu0 0
    %487 = vmatprep.subr.bf16.mxu0 0
    %488 = vmatpush1.bf16.msra.mxu0 0
    %489 = vmatprep.subr.bf16.mxu0 0
    %490 = vmatpush1.bf16.msra.mxu0 0
    %491 = vmatprep.mubr.bf16.mxu0 0
    %492 = vmatmul.mubr.bf16.gmra.mrb[0].mxu0 %v398
    %v493 = vpop.f32.mrb[0].mxu0
    %v494 = vadd.f32 0.0, %v493
    %v495 = vpop.f32.mrb[0].mxu0
    %v496 = vadd.f32 0.0, %v495
    %v497 = vpop.f32.mrb[0].mxu0
    %v498 = vpop.f32.mrb[0].mxu0
    %499 = vdwg.mxu0
    %500 = vmatprep.subr.bf16.mxu0 %v416
    %501 = vmatpush1.bf16.msra.mxu0 %v413
    %502 = vmatprep.subr.bf16.mxu0 0
    %503 = vmatpush1.bf16.msra.mxu0 0
    %504 = vmatprep.subr.bf16.mxu0 0
    %505 = vmatpush1.bf16.msra.mxu0 0
    %506 = vmatprep.subr.bf16.mxu0 0
    %507 = vmatpush1.bf16.msra.mxu0 0
    %508 = vmatprep.subr.bf16.mxu0 0
    %509 = vmatpush1.bf16.msra.mxu0 0
    %510 = vmatprep.subr.bf16.mxu0 0
    %511 = vmatpush1.bf16.msra.mxu0 0
    %512 = vmatprep.subr.bf16.mxu0 0
    %513 = vmatpush1.bf16.msra.mxu0 0
    %514 = vmatprep.subr.bf16.mxu0 0
    %515 = vmatpush1.bf16.msra.mxu0 0
    %516 = vmatprep.subr.bf16.mxu0 0
    %517 = vmatpush1.bf16.msra.mxu0 0
    %518 = vmatprep.subr.bf16.mxu0 0
    %519 = vmatpush1.bf16.msra.mxu0 0
    %520 = vmatprep.subr.bf16.mxu0 0
    %521 = vmatpush1.bf16.msra.mxu0 0
    %522 = vmatprep.subr.bf16.mxu0 0
    %523 = vmatpush1.bf16.msra.mxu0 0
    %524 = vmatprep.subr.bf16.mxu0 0
    %525 = vmatpush1.bf16.msra.mxu0 0
    %526 = vmatprep.subr.bf16.mxu0 0
    %527 = vmatpush1.bf16.msra.mxu0 0
    %528 = vmatprep.subr.bf16.mxu0 0
    %529 = vmatpush1.bf16.msra.mxu0 0
    %530 = vmatprep.subr.bf16.mxu0 0
    %531 = vmatpush1.bf16.msra.mxu0 0
    %532 = vmatprep.mubr.bf16.mxu0 0
    %533 = vmatmul.mubr.bf16.gmra.mrb[0].mxu0 %v398
    %v534 = vpop.f32.mrb[0].mxu0
    %v535 = vadd.f32 0.0, %v534
    %v536 = vpop.f32.mrb[0].mxu0
    %v537 = vadd.f32 0.0, %v536
    %v538 = vpop.f32.mrb[0].mxu0
    %v539 = vpop.f32.mrb[0].mxu0
    %540 = vdwg.mxu0
    %v541 = vadd.f32 %v286, %v453
    %v542 = vadd.f32 %v288, %v455
    %v543 = vadd.f32 %v327, %v494
    %v544 = vadd.f32 %v329, %v496
    %v545 = vadd.f32 %v368, %v535
    %v546 = vadd.f32 %v370, %v537
    %s547 = scalar_lea.vmem %s0, 12
    %v548 = vld [vmem:[%s547] sm:$0xf]
    %549 = vrot.lane.b32.xlu0 %v53, 110
    %v550 = vpop.permute.xlu0 %549
    %551 = vrot.lane.b32.xlu0 %v54, 110
    %v552 = vpop.permute.xlu0 %551
    %553 = vrot.lane.b32.xlu0 %v55, 110
    %v554 = vpop.permute.xlu0 %553
    %555 = vrot.lane.b32.xlu0 %v56, 110
    %v556 = vpop.permute.xlu0 %555
    %557 = vrot.lane.b32.xlu0 %v57, 110
    %v558 = vpop.permute.xlu0 %557
    %559 = vrot.lane.b32.xlu0 %v58, 110
    %v560 = vpop.permute.xlu0 %559
    %561 = vrot.lane.b32.xlu0 %v43, 110
    %v562 = vpop.permute.xlu0 %561
    %vm563 = vcmask 900096
    %v564 = vsel %vm563, %v550, %v552
    %v565 = vsel %vm563, %v552, %v554
    %v566 = vsel %vm563, %v554, %v556
    %v567 = vsel %vm563, %v556, %v558
    %v568 = vsel %vm563, %v558, %v560
    %v569 = vsel %vm563, %v560, %v562
    %v571 = vsel %vm84, %v548, 0
    %v574 = vsel %vm88, %v564, 0
    %v577 = vsel %vm88, %v565, 0
    %v580 = vsel %vm88, %v566, 0
    %v583 = vsel %vm88, %v567, 0
    %v586 = vsel %vm88, %v568, 0
    %v589 = vsel %vm88, %v569, 0
    %591 = vmatprep.subr.bf16.mxu0 %v577
    %592 = vmatpush1.bf16.msra.mxu0 %v574
    %593 = vmatprep.subr.bf16.mxu0 0
    %594 = vmatpush1.bf16.msra.mxu0 0
    %595 = vmatprep.subr.bf16.mxu0 0
    %596 = vmatpush1.bf16.msra.mxu0 0
    %597 = vmatprep.subr.bf16.mxu0 0
    %598 = vmatpush1.bf16.msra.mxu0 0
    %599 = vmatprep.subr.bf16.mxu0 0
    %600 = vmatpush1.bf16.msra.mxu0 0
    %601 = vmatprep.subr.bf16.mxu0 0
    %602 = vmatpush1.bf16.msra.mxu0 0
    %603 = vmatprep.subr.bf16.mxu0 0
    %604 = vmatpush1.bf16.msra.mxu0 0
    %605 = vmatprep.subr.bf16.mxu0 0
    %606 = vmatpush1.bf16.msra.mxu0 0
    %607 = vmatprep.subr.bf16.mxu0 0
    %608 = vmatpush1.bf16.msra.mxu0 0
    %609 = vmatprep.subr.bf16.mxu0 0
    %610 = vmatpush1.bf16.msra.mxu0 0
    %611 = vmatprep.subr.bf16.mxu0 0
    %612 = vmatpush1.bf16.msra.mxu0 0
    %613 = vmatprep.subr.bf16.mxu0 0
    %614 = vmatpush1.bf16.msra.mxu0 0
    %615 = vmatprep.subr.bf16.mxu0 0
    %616 = vmatpush1.bf16.msra.mxu0 0
    %617 = vmatprep.subr.bf16.mxu0 0
    %618 = vmatpush1.bf16.msra.mxu0 0
    %619 = vmatprep.subr.bf16.mxu0 0
    %620 = vmatpush1.bf16.msra.mxu0 0
    %621 = vmatprep.subr.bf16.mxu0 0
    %622 = vmatpush1.bf16.msra.mxu0 0
    %623 = vmatprep.mubr.bf16.mxu0 0
    %624 = vmatmul.mubr.bf16.gmra.mrb[0].mxu0 %v571
    %v625 = vpop.f32.mrb[0].mxu0
    %v626 = vadd.f32 0.0, %v625
    %v627 = vpop.f32.mrb[0].mxu0
    %v628 = vadd.f32 0.0, %v627
    %v629 = vpop.f32.mrb[0].mxu0
    %v630 = vpop.f32.mrb[0].mxu0
    %631 = vdwg.mxu0
    %632 = vmatprep.subr.bf16.mxu0 %v583
    %633 = vmatpush1.bf16.msra.mxu0 %v580
    %634 = vmatprep.subr.bf16.mxu0 0
    %635 = vmatpush1.bf16.msra.mxu0 0
    %636 = vmatprep.subr.bf16.mxu0 0
    %637 = vmatpush1.bf16.msra.mxu0 0
    %638 = vmatprep.subr.bf16.mxu0 0
    %639 = vmatpush1.bf16.msra.mxu0 0
    %640 = vmatprep.subr.bf16.mxu0 0
    %641 = vmatpush1.bf16.msra.mxu0 0
    %642 = vmatprep.subr.bf16.mxu0 0
    %643 = vmatpush1.bf16.msra.mxu0 0
    %644 = vmatprep.subr.bf16.mxu0 0
    %645 = vmatpush1.bf16.msra.mxu0 0
    %646 = vmatprep.subr.bf16.mxu0 0
    %647 = vmatpush1.bf16.msra.mxu0 0
    %648 = vmatprep.subr.bf16.mxu0 0
    %649 = vmatpush1.bf16.msra.mxu0 0
    %650 = vmatprep.subr.bf16.mxu0 0
    %651 = vmatpush1.bf16.msra.mxu0 0
    %652 = vmatprep.subr.bf16.mxu0 0
    %653 = vmatpush1.bf16.msra.mxu0 0
    %654 = vmatprep.subr.bf16.mxu0 0
    %655 = vmatpush1.bf16.msra.mxu0 0
    %656 = vmatprep.subr.bf16.mxu0 0
    %657 = vmatpush1.bf16.msra.mxu0 0
    %658 = vmatprep.subr.bf16.mxu0 0
    %659 = vmatpush1.bf16.msra.mxu0 0
    %660 = vmatprep.subr.bf16.mxu0 0
    %661 = vmatpush1.bf16.msra.mxu0 0
    %662 = vmatprep.subr.bf16.mxu0 0
    %663 = vmatpush1.bf16.msra.mxu0 0
    %664 = vmatprep.mubr.bf16.mxu0 0
    %665 = vmatmul.mubr.bf16.gmra.mrb[0].mxu0 %v571
    %v666 = vpop.f32.mrb[0].mxu0
    %v667 = vadd.f32 0.0, %v666
    %v668 = vpop.f32.mrb[0].mxu0
    %v669 = vadd.f32 0.0, %v668
    %v670 = vpop.f32.mrb[0].mxu0
    %v671 = vpop.f32.mrb[0].mxu0
    %672 = vdwg.mxu0
    %673 = vmatprep.subr.bf16.mxu0 %v589
    %674 = vmatpush1.bf16.msra.mxu0 %v586
    %675 = vmatprep.subr.bf16.mxu0 0
    %676 = vmatpush1.bf16.msra.mxu0 0
    %677 = vmatprep.subr.bf16.mxu0 0
    %678 = vmatpush1.bf16.msra.mxu0 0
    %679 = vmatprep.subr.bf16.mxu0 0
    %680 = vmatpush1.bf16.msra.mxu0 0
    %681 = vmatprep.subr.bf16.mxu0 0
    %682 = vmatpush1.bf16.msra.mxu0 0
    %683 = vmatprep.subr.bf16.mxu0 0
    %684 = vmatpush1.bf16.msra.mxu0 0
    %685 = vmatprep.subr.bf16.mxu0 0
    %686 = vmatpush1.bf16.msra.mxu0 0
    %687 = vmatprep.subr.bf16.mxu0 0
    %688 = vmatpush1.bf16.msra.mxu0 0
    %689 = vmatprep.subr.bf16.mxu0 0
    %690 = vmatpush1.bf16.msra.mxu0 0
    %691 = vmatprep.subr.bf16.mxu0 0
    %692 = vmatpush1.bf16.msra.mxu0 0
    %693 = vmatprep.subr.bf16.mxu0 0
    %694 = vmatpush1.bf16.msra.mxu0 0
    %695 = vmatprep.subr.bf16.mxu0 0
    %696 = vmatpush1.bf16.msra.mxu0 0
    %697 = vmatprep.subr.bf16.mxu0 0
    %698 = vmatpush1.bf16.msra.mxu0 0
    %699 = vmatprep.subr.bf16.mxu0 0
    %700 = vmatpush1.bf16.msra.mxu0 0
    %701 = vmatprep.subr.bf16.mxu0 0
    %702 = vmatpush1.bf16.msra.mxu0 0
    %703 = vmatprep.subr.bf16.mxu0 0
    %704 = vmatpush1.bf16.msra.mxu0 0
    %705 = vmatprep.mubr.bf16.mxu0 0
    %706 = vmatmul.mubr.bf16.gmra.mrb[0].mxu0 %v571
    %v707 = vpop.f32.mrb[0].mxu0
    %v708 = vadd.f32 0.0, %v707
    %v709 = vpop.f32.mrb[0].mxu0
    %v710 = vadd.f32 0.0, %v709
    %v711 = vpop.f32.mrb[0].mxu0
    %v712 = vpop.f32.mrb[0].mxu0
    %713 = vdwg.mxu0
    %v714 = vadd.f32 %v541, %v626
    %v715 = vadd.f32 %v542, %v628
    %v716 = vadd.f32 %v543, %v667
    %v717 = vadd.f32 %v544, %v669
    %v718 = vadd.f32 %v545, %v708
    %v719 = vadd.f32 %v546, %v710
    %s720 = scalar_lea.vmem %s0, 16
    %v721 = vld [vmem:[%s720] sm:$0xf]
    %722 = vrot.lane.b32.xlu0 %v53, 109
    %v723 = vpop.permute.xlu0 %722
    %724 = vrot.lane.b32.xlu0 %v54, 109
    %v725 = vpop.permute.xlu0 %724
    %726 = vrot.lane.b32.xlu0 %v55, 109
    %v727 = vpop.permute.xlu0 %726
    %728 = vrot.lane.b32.xlu0 %v56, 109
    %v729 = vpop.permute.xlu0 %728
    %730 = vrot.lane.b32.xlu0 %v57, 109
    %v731 = vpop.permute.xlu0 %730
    %732 = vrot.lane.b32.xlu0 %v58, 109
    %v733 = vpop.permute.xlu0 %732
    %734 = vrot.lane.b32.xlu0 %v43, 109
    %v735 = vpop.permute.xlu0 %734
    %vm736 = vcmask 891904
    %v737 = vsel %vm736, %v723, %v725
    %v738 = vsel %vm736, %v725, %v727
    %v739 = vsel %vm736, %v727, %v729
    %v740 = vsel %vm736, %v729, %v731
    %v741 = vsel %vm736, %v731, %v733
    %v742 = vsel %vm736, %v733, %v735
    %v744 = vsel %vm84, %v721, 0
    %v747 = vsel %vm88, %v737, 0
    %v750 = vsel %vm88, %v738, 0
    %v753 = vsel %vm88, %v739, 0
    %v756 = vsel %vm88, %v740, 0
    %v759 = vsel %vm88, %v741, 0
    %v762 = vsel %vm88, %v742, 0
    %764 = vmatprep.subr.bf16.mxu0 %v750
    %765 = vmatpush1.bf16.msra.mxu0 %v747
    %766 = vmatprep.subr.bf16.mxu0 0
    %767 = vmatpush1.bf16.msra.mxu0 0
    %768 = vmatprep.subr.bf16.mxu0 0
    %769 = vmatpush1.bf16.msra.mxu0 0
    %770 = vmatprep.subr.bf16.mxu0 0
    %771 = vmatpush1.bf16.msra.mxu0 0
    %772 = vmatprep.subr.bf16.mxu0 0
    %773 = vmatpush1.bf16.msra.mxu0 0
    %774 = vmatprep.subr.bf16.mxu0 0
    %775 = vmatpush1.bf16.msra.mxu0 0
    %776 = vmatprep.subr.bf16.mxu0 0
    %777 = vmatpush1.bf16.msra.mxu0 0
    %778 = vmatprep.subr.bf16.mxu0 0
    %779 = vmatpush1.bf16.msra.mxu0 0
    %780 = vmatprep.subr.bf16.mxu0 0
    %781 = vmatpush1.bf16.msra.mxu0 0
    %782 = vmatprep.subr.bf16.mxu0 0
    %783 = vmatpush1.bf16.msra.mxu0 0
    %784 = vmatprep.subr.bf16.mxu0 0
    %785 = vmatpush1.bf16.msra.mxu0 0
    %786 = vmatprep.subr.bf16.mxu0 0
    %787 = vmatpush1.bf16.msra.mxu0 0
    %788 = vmatprep.subr.bf16.mxu0 0
    %789 = vmatpush1.bf16.msra.mxu0 0
    %790 = vmatprep.subr.bf16.mxu0 0
    %791 = vmatpush1.bf16.msra.mxu0 0
    %792 = vmatprep.subr.bf16.mxu0 0
    %793 = vmatpush1.bf16.msra.mxu0 0
    %794 = vmatprep.subr.bf16.mxu0 0
    %795 = vmatpush1.bf16.msra.mxu0 0
    %796 = vmatprep.mubr.bf16.mxu0 0
    %797 = vmatmul.mubr.bf16.gmra.mrb[0].mxu0 %v744
    %v798 = vpop.f32.mrb[0].mxu0
    %v799 = vadd.f32 0.0, %v798
    %v800 = vpop.f32.mrb[0].mxu0
    %v801 = vadd.f32 0.0, %v800
    %v802 = vpop.f32.mrb[0].mxu0
    %v803 = vpop.f32.mrb[0].mxu0
    %804 = vdwg.mxu0
    %805 = vmatprep.subr.bf16.mxu0 %v756
    %806 = vmatpush1.bf16.msra.mxu0 %v753
    %807 = vmatprep.subr.bf16.mxu0 0
    %808 = vmatpush1.bf16.msra.mxu0 0
    %809 = vmatprep.subr.bf16.mxu0 0
    %810 = vmatpush1.bf16.msra.mxu0 0
    %811 = vmatprep.subr.bf16.mxu0 0
    %812 = vmatpush1.bf16.msra.mxu0 0
    %813 = vmatprep.subr.bf16.mxu0 0
    %814 = vmatpush1.bf16.msra.mxu0 0
    %815 = vmatprep.subr.bf16.mxu0 0
    %816 = vmatpush1.bf16.msra.mxu0 0
    %817 = vmatprep.subr.bf16.mxu0 0
    %818 = vmatpush1.bf16.msra.mxu0 0
    %819 = vmatprep.subr.bf16.mxu0 0
    %820 = vmatpush1.bf16.msra.mxu0 0
    %821 = vmatprep.subr.bf16.mxu0 0
    %822 = vmatpush1.bf16.msra.mxu0 0
    %823 = vmatprep.subr.bf16.mxu0 0
    %824 = vmatpush1.bf16.msra.mxu0 0
    %825 = vmatprep.subr.bf16.mxu0 0
    %826 = vmatpush1.bf16.msra.mxu0 0
    %827 = vmatprep.subr.bf16.mxu0 0
    %828 = vmatpush1.bf16.msra.mxu0 0
    %829 = vmatprep.subr.bf16.mxu0 0
    %830 = vmatpush1.bf16.msra.mxu0 0
    %831 = vmatprep.subr.bf16.mxu0 0
    %832 = vmatpush1.bf16.msra.mxu0 0
    %833 = vmatprep.subr.bf16.mxu0 0
    %834 = vmatpush1.bf16.msra.mxu0 0
    %835 = vmatprep.subr.bf16.mxu0 0
    %836 = vmatpush1.bf16.msra.mxu0 0
    %837 = vmatprep.mubr.bf16.mxu0 0
    %838 = vmatmul.mubr.bf16.gmra.mrb[0].mxu0 %v744
    %v839 = vpop.f32.mrb[0].mxu0
    %v840 = vadd.f32 0.0, %v839
    %v841 = vpop.f32.mrb[0].mxu0
    %v842 = vadd.f32 0.0, %v841
    %v843 = vpop.f32.mrb[0].mxu0
    %v844 = vpop.f32.mrb[0].mxu0
    %845 = vdwg.mxu0
    %846 = vmatprep.subr.bf16.mxu0 %v762
    %847 = vmatpush1.bf16.msra.mxu0 %v759
    %848 = vmatprep.subr.bf16.mxu0 0
    %849 = vmatpush1.bf16.msra.mxu0 0
    %850 = vmatprep.subr.bf16.mxu0 0
    %851 = vmatpush1.bf16.msra.mxu0 0
    %852 = vmatprep.subr.bf16.mxu0 0
    %853 = vmatpush1.bf16.msra.mxu0 0
    %854 = vmatprep.subr.bf16.mxu0 0
    %855 = vmatpush1.bf16.msra.mxu0 0
    %856 = vmatprep.subr.bf16.mxu0 0
    %857 = vmatpush1.bf16.msra.mxu0 0
    %858 = vmatprep.subr.bf16.mxu0 0
    %859 = vmatpush1.bf16.msra.mxu0 0
    %860 = vmatprep.subr.bf16.mxu0 0
    %861 = vmatpush1.bf16.msra.mxu0 0
    %862 = vmatprep.subr.bf16.mxu0 0
    %863 = vmatpush1.bf16.msra.mxu0 0
    %864 = vmatprep.subr.bf16.mxu0 0
    %865 = vmatpush1.bf16.msra.mxu0 0
    %866 = vmatprep.subr.bf16.mxu0 0
    %867 = vmatpush1.bf16.msra.mxu0 0
    %868 = vmatprep.subr.bf16.mxu0 0
    %869 = vmatpush1.bf16.msra.mxu0 0
    %870 = vmatprep.subr.bf16.mxu0 0
    %871 = vmatpush1.bf16.msra.mxu0 0
    %872 = vmatprep.subr.bf16.mxu0 0
    %873 = vmatpush1.bf16.msra.mxu0 0
    %874 = vmatprep.subr.bf16.mxu0 0
    %875 = vmatpush1.bf16.msra.mxu0 0
    %876 = vmatprep.subr.bf16.mxu0 0
    %877 = vmatpush1.bf16.msra.mxu0 0
    %878 = vmatprep.mubr.bf16.mxu0 0
    %879 = vmatmul.mubr.bf16.gmra.mrb[0].mxu0 %v744
    %v880 = vpop.f32.mrb[0].mxu0
    %v881 = vadd.f32 0.0, %v880
    %v882 = vpop.f32.mrb[0].mxu0
    %v883 = vadd.f32 0.0, %v882
    %v884 = vpop.f32.mrb[0].mxu0
    %v885 = vpop.f32.mrb[0].mxu0
    %886 = vdwg.mxu0
    %v887 = vadd.f32 %v714, %v799
    %v888 = vadd.f32 %v715, %v801
    %v889 = vadd.f32 %v716, %v840
    %v890 = vadd.f32 %v717, %v842
    %v891 = vadd.f32 %v718, %v881
    %v892 = vadd.f32 %v719, %v883
    %s893 = scalar_lea.vmem %s0, 20
    %v894 = vld [vmem:[%s893] sm:$0xf]
    %895 = vrot.lane.b32.xlu0 %v53, 108
    %v896 = vpop.permute.xlu0 %895
    %897 = vrot.lane.b32.xlu0 %v54, 108
    %v898 = vpop.permute.xlu0 %897
    %899 = vrot.lane.b32.xlu0 %v55, 108
    %v900 = vpop.permute.xlu0 %899
    %901 = vrot.lane.b32.xlu0 %v56, 108
    %v902 = vpop.permute.xlu0 %901
    %903 = vrot.lane.b32.xlu0 %v57, 108
    %v904 = vpop.permute.xlu0 %903
    %905 = vrot.lane.b32.xlu0 %v58, 108
    %v906 = vpop.permute.xlu0 %905
    %907 = vrot.lane.b32.xlu0 %v43, 108
    %v908 = vpop.permute.xlu0 %907
    %vm909 = vcmask 883712
    %v910 = vsel %vm909, %v896, %v898
    %v911 = vsel %vm909, %v898, %v900
    %v912 = vsel %vm909, %v900, %v902
    %v913 = vsel %vm909, %v902, %v904
    %v914 = vsel %vm909, %v904, %v906
    %v915 = vsel %vm909, %v906, %v908
    %v917 = vsel %vm84, %v894, 0
    %v920 = vsel %vm88, %v910, 0
    %v923 = vsel %vm88, %v911, 0
    %v926 = vsel %vm88, %v912, 0
    %v929 = vsel %vm88, %v913, 0
    %v932 = vsel %vm88, %v914, 0
    %v935 = vsel %vm88, %v915, 0
    %937 = vmatprep.subr.bf16.mxu0 %v923
    %938 = vmatpush1.bf16.msra.mxu0 %v920
    %939 = vmatprep.subr.bf16.mxu0 0
    %940 = vmatpush1.bf16.msra.mxu0 0
    %941 = vmatprep.subr.bf16.mxu0 0
    %942 = vmatpush1.bf16.msra.mxu0 0
    %943 = vmatprep.subr.bf16.mxu0 0
    %944 = vmatpush1.bf16.msra.mxu0 0
    %945 = vmatprep.subr.bf16.mxu0 0
    %946 = vmatpush1.bf16.msra.mxu0 0
    %947 = vmatprep.subr.bf16.mxu0 0
    %948 = vmatpush1.bf16.msra.mxu0 0
    %949 = vmatprep.subr.bf16.mxu0 0
    %950 = vmatpush1.bf16.msra.mxu0 0
    %951 = vmatprep.subr.bf16.mxu0 0
    %952 = vmatpush1.bf16.msra.mxu0 0
    %953 = vmatprep.subr.bf16.mxu0 0
    %954 = vmatpush1.bf16.msra.mxu0 0
    %955 = vmatprep.subr.bf16.mxu0 0
    %956 = vmatpush1.bf16.msra.mxu0 0
    %957 = vmatprep.subr.bf16.mxu0 0
    %958 = vmatpush1.bf16.msra.mxu0 0
    %959 = vmatprep.subr.bf16.mxu0 0
    %960 = vmatpush1.bf16.msra.mxu0 0
    %961 = vmatprep.subr.bf16.mxu0 0
    %962 = vmatpush1.bf16.msra.mxu0 0
    %963 = vmatprep.subr.bf16.mxu0 0
    %964 = vmatpush1.bf16.msra.mxu0 0
    %965 = vmatprep.subr.bf16.mxu0 0
    %966 = vmatpush1.bf16.msra.mxu0 0
    %967 = vmatprep.subr.bf16.mxu0 0
    %968 = vmatpush1.bf16.msra.mxu0 0
    %969 = vmatprep.mubr.bf16.mxu0 0
    %970 = vmatmul.mubr.bf16.gmra.mrb[0].mxu0 %v917
    %v971 = vpop.f32.mrb[0].mxu0
    %v972 = vadd.f32 0.0, %v971
    %v973 = vpop.f32.mrb[0].mxu0
    %v974 = vadd.f32 0.0, %v973
    %v975 = vpop.f32.mrb[0].mxu0
    %v976 = vpop.f32.mrb[0].mxu0
    %977 = vdwg.mxu0
    %978 = vmatprep.subr.bf16.mxu0 %v929
    %979 = vmatpush1.bf16.msra.mxu0 %v926
    %980 = vmatprep.subr.bf16.mxu0 0
    %981 = vmatpush1.bf16.msra.mxu0 0
    %982 = vmatprep.subr.bf16.mxu0 0
    %983 = vmatpush1.bf16.msra.mxu0 0
    %984 = vmatprep.subr.bf16.mxu0 0
    %985 = vmatpush1.bf16.msra.mxu0 0
    %986 = vmatprep.subr.bf16.mxu0 0
    %987 = vmatpush1.bf16.msra.mxu0 0
    %988 = vmatprep.subr.bf16.mxu0 0
    %989 = vmatpush1.bf16.msra.mxu0 0
    %990 = vmatprep.subr.bf16.mxu0 0
    %991 = vmatpush1.bf16.msra.mxu0 0
    %992 = vmatprep.subr.bf16.mxu0 0
    %993 = vmatpush1.bf16.msra.mxu0 0
    %994 = vmatprep.subr.bf16.mxu0 0
    %995 = vmatpush1.bf16.msra.mxu0 0
    %996 = vmatprep.subr.bf16.mxu0 0
    %997 = vmatpush1.bf16.msra.mxu0 0
    %998 = vmatprep.subr.bf16.mxu0 0
    %999 = vmatpush1.bf16.msra.mxu0 0
    %1000 = vmatprep.subr.bf16.mxu0 0
    %1001 = vmatpush1.bf16.msra.mxu0 0
    %1002 = vmatprep.subr.bf16.mxu0 0
    %1003 = vmatpush1.bf16.msra.mxu0 0
    %1004 = vmatprep.subr.bf16.mxu0 0
    %1005 = vmatpush1.bf16.msra.mxu0 0
    %1006 = vmatprep.subr.bf16.mxu0 0
    %1007 = vmatpush1.bf16.msra.mxu0 0
    %1008 = vmatprep.subr.bf16.mxu0 0
    %1009 = vmatpush1.bf16.msra.mxu0 0
    %1010 = vmatprep.mubr.bf16.mxu0 0
    %1011 = vmatmul.mubr.bf16.gmra.mrb[0].mxu0 %v917
    %v1012 = vpop.f32.mrb[0].mxu0
    %v1013 = vadd.f32 0.0, %v1012
    %v1014 = vpop.f32.mrb[0].mxu0
    %v1015 = vadd.f32 0.0, %v1014
    %v1016 = vpop.f32.mrb[0].mxu0
    %v1017 = vpop.f32.mrb[0].mxu0
    %1018 = vdwg.mxu0
    %1019 = vmatprep.subr.bf16.mxu0 %v935
    %1020 = vmatpush1.bf16.msra.mxu0 %v932
    %1021 = vmatprep.subr.bf16.mxu0 0
    %1022 = vmatpush1.bf16.msra.mxu0 0
    %1023 = vmatprep.subr.bf16.mxu0 0
    %1024 = vmatpush1.bf16.msra.mxu0 0
    %1025 = vmatprep.subr.bf16.mxu0 0
    %1026 = vmatpush1.bf16.msra.mxu0 0
    %1027 = vmatprep.subr.bf16.mxu0 0
    %1028 = vmatpush1.bf16.msra.mxu0 0
    %1029 = vmatprep.subr.bf16.mxu0 0
    %1030 = vmatpush1.bf16.msra.mxu0 0
    %1031 = vmatprep.subr.bf16.mxu0 0
    %1032 = vmatpush1.bf16.msra.mxu0 0
    %1033 = vmatprep.subr.bf16.mxu0 0
    %1034 = vmatpush1.bf16.msra.mxu0 0
    %1035 = vmatprep.subr.bf16.mxu0 0
    %1036 = vmatpush1.bf16.msra.mxu0 0
    %1037 = vmatprep.subr.bf16.mxu0 0
    %1038 = vmatpush1.bf16.msra.mxu0 0
    %1039 = vmatprep.subr.bf16.mxu0 0
    %1040 = vmatpush1.bf16.msra.mxu0 0
    %1041 = vmatprep.subr.bf16.mxu0 0
    %1042 = vmatpush1.bf16.msra.mxu0 0
    %1043 = vmatprep.subr.bf16.mxu0 0
    %1044 = vmatpush1.bf16.msra.mxu0 0
    %1045 = vmatprep.subr.bf16.mxu0 0
    %1046 = vmatpush1.bf16.msra.mxu0 0
    %1047 = vmatprep.subr.bf16.mxu0 0
    %1048 = vmatpush1.bf16.msra.mxu0 0
    %1049 = vmatprep.subr.bf16.mxu0 0
    %1050 = vmatpush1.bf16.msra.mxu0 0
    %1051 = vmatprep.mubr.bf16.mxu0 0
    %1052 = vmatmul.mubr.bf16.gmra.mrb[0].mxu0 %v917
    %v1053 = vpop.f32.mrb[0].mxu0
    %v1054 = vadd.f32 0.0, %v1053
    %v1055 = vpop.f32.mrb[0].mxu0
    %v1056 = vadd.f32 0.0, %v1055
    %v1057 = vpop.f32.mrb[0].mxu0
    %v1058 = vpop.f32.mrb[0].mxu0
    %1059 = vdwg.mxu0
    %v1060 = vadd.f32 %v887, %v972
    %v1061 = vadd.f32 %v888, %v974
    %v1062 = vadd.f32 %v889, %v1013
    %v1063 = vadd.f32 %v890, %v1015
    %v1064 = vadd.f32 %v891, %v1054
    %v1065 = vadd.f32 %v892, %v1056
    %s1066 = scalar_lea.vmem %s0, 24
    %v1067 = vld [vmem:[%s1066] sm:$0xf]
    %1068 = vrot.lane.b32.xlu0 %v53, 92
    %v1069 = vpop.permute.xlu0 %1068
    %1070 = vrot.lane.b32.xlu0 %v54, 92
    %v1071 = vpop.permute.xlu0 %1070
    %1072 = vrot.lane.b32.xlu0 %v55, 92
    %v1073 = vpop.permute.xlu0 %1072
    %1074 = vrot.lane.b32.xlu0 %v56, 92
    %v1075 = vpop.permute.xlu0 %1074
    %1076 = vrot.lane.b32.xlu0 %v57, 92
    %v1077 = vpop.permute.xlu0 %1076
    %1078 = vrot.lane.b32.xlu0 %v58, 92
    %v1079 = vpop.permute.xlu0 %1078
    %1080 = vrot.lane.b32.xlu0 %v43, 92
    %v1081 = vpop.permute.xlu0 %1080
    %vm1082 = vcmask 752640
    %v1083 = vsel %vm1082, %v1069, %v1071
    %v1084 = vsel %vm1082, %v1071, %v1073
    %v1085 = vsel %vm1082, %v1073, %v1075
    %v1086 = vsel %vm1082, %v1075, %v1077
    %v1087 = vsel %vm1082, %v1077, %v1079
    %v1088 = vsel %vm1082, %v1079, %v1081
    %v1090 = vsel %vm84, %v1067, 0
    %v1093 = vsel %vm88, %v1083, 0
    %v1096 = vsel %vm88, %v1084, 0
    %v1099 = vsel %vm88, %v1085, 0
    %v1102 = vsel %vm88, %v1086, 0
    %v1105 = vsel %vm88, %v1087, 0
    %v1108 = vsel %vm88, %v1088, 0
    %1110 = vmatprep.subr.bf16.mxu0 %v1096
    %1111 = vmatpush1.bf16.msra.mxu0 %v1093
    %1112 = vmatprep.subr.bf16.mxu0 0
    %1113 = vmatpush1.bf16.msra.mxu0 0
    %1114 = vmatprep.subr.bf16.mxu0 0
    %1115 = vmatpush1.bf16.msra.mxu0 0
    %1116 = vmatprep.subr.bf16.mxu0 0
    %1117 = vmatpush1.bf16.msra.mxu0 0
    %1118 = vmatprep.subr.bf16.mxu0 0
    %1119 = vmatpush1.bf16.msra.mxu0 0
    %1120 = vmatprep.subr.bf16.mxu0 0
    %1121 = vmatpush1.bf16.msra.mxu0 0
    %1122 = vmatprep.subr.bf16.mxu0 0
    %1123 = vmatpush1.bf16.msra.mxu0 0
    %1124 = vmatprep.subr.bf16.mxu0 0
    %1125 = vmatpush1.bf16.msra.mxu0 0
    %1126 = vmatprep.subr.bf16.mxu0 0
    %1127 = vmatpush1.bf16.msra.mxu0 0
    %1128 = vmatprep.subr.bf16.mxu0 0
    %1129 = vmatpush1.bf16.msra.mxu0 0
    %1130 = vmatprep.subr.bf16.mxu0 0
    %1131 = vmatpush1.bf16.msra.mxu0 0
    %1132 = vmatprep.subr.bf16.mxu0 0
    %1133 = vmatpush1.bf16.msra.mxu0 0
    %1134 = vmatprep.subr.bf16.mxu0 0
    %1135 = vmatpush1.bf16.msra.mxu0 0
    %1136 = vmatprep.subr.bf16.mxu0 0
    %1137 = vmatpush1.bf16.msra.mxu0 0
    %1138 = vmatprep.subr.bf16.mxu0 0
    %1139 = vmatpush1.bf16.msra.mxu0 0
    %1140 = vmatprep.subr.bf16.mxu0 0
    %1141 = vmatpush1.bf16.msra.mxu0 0
    %1142 = vmatprep.mubr.bf16.mxu0 0
    %1143 = vmatmul.mubr.bf16.gmra.mrb[0].mxu0 %v1090
    %v1144 = vpop.f32.mrb[0].mxu0
    %v1145 = vadd.f32 0.0, %v1144
    %v1146 = vpop.f32.mrb[0].mxu0
    %v1147 = vadd.f32 0.0, %v1146
    %v1148 = vpop.f32.mrb[0].mxu0
    %v1149 = vpop.f32.mrb[0].mxu0
    %1150 = vdwg.mxu0
    %1151 = vmatprep.subr.bf16.mxu0 %v1102
    %1152 = vmatpush1.bf16.msra.mxu0 %v1099
    %1153 = vmatprep.subr.bf16.mxu0 0
    %1154 = vmatpush1.bf16.msra.mxu0 0
    %1155 = vmatprep.subr.bf16.mxu0 0
    %1156 = vmatpush1.bf16.msra.mxu0 0
    %1157 = vmatprep.subr.bf16.mxu0 0
    %1158 = vmatpush1.bf16.msra.mxu0 0
    %1159 = vmatprep.subr.bf16.mxu0 0
    %1160 = vmatpush1.bf16.msra.mxu0 0
    %1161 = vmatprep.subr.bf16.mxu0 0
    %1162 = vmatpush1.bf16.msra.mxu0 0
    %1163 = vmatprep.subr.bf16.mxu0 0
    %1164 = vmatpush1.bf16.msra.mxu0 0
    %1165 = vmatprep.subr.bf16.mxu0 0
    %1166 = vmatpush1.bf16.msra.mxu0 0
    %1167 = vmatprep.subr.bf16.mxu0 0
    %1168 = vmatpush1.bf16.msra.mxu0 0
    %1169 = vmatprep.subr.bf16.mxu0 0
    %1170 = vmatpush1.bf16.msra.mxu0 0
    %1171 = vmatprep.subr.bf16.mxu0 0
    %1172 = vmatpush1.bf16.msra.mxu0 0
    %1173 = vmatprep.subr.bf16.mxu0 0
    %1174 = vmatpush1.bf16.msra.mxu0 0
    %1175 = vmatprep.subr.bf16.mxu0 0
    %1176 = vmatpush1.bf16.msra.mxu0 0
    %1177 = vmatprep.subr.bf16.mxu0 0
    %1178 = vmatpush1.bf16.msra.mxu0 0
    %1179 = vmatprep.subr.bf16.mxu0 0
    %1180 = vmatpush1.bf16.msra.mxu0 0
    %1181 = vmatprep.subr.bf16.mxu0 0
    %1182 = vmatpush1.bf16.msra.mxu0 0
    %1183 = vmatprep.mubr.bf16.mxu0 0
    %1184 = vmatmul.mubr.bf16.gmra.mrb[0].mxu0 %v1090
    %v1185 = vpop.f32.mrb[0].mxu0
    %v1186 = vadd.f32 0.0, %v1185
    %v1187 = vpop.f32.mrb[0].mxu0
    %v1188 = vadd.f32 0.0, %v1187
    %v1189 = vpop.f32.mrb[0].mxu0
    %v1190 = vpop.f32.mrb[0].mxu0
    %1191 = vdwg.mxu0
    %1192 = vmatprep.subr.bf16.mxu0 %v1108
    %1193 = vmatpush1.bf16.msra.mxu0 %v1105
    %1194 = vmatprep.subr.bf16.mxu0 0
    %1195 = vmatpush1.bf16.msra.mxu0 0
    %1196 = vmatprep.subr.bf16.mxu0 0
    %1197 = vmatpush1.bf16.msra.mxu0 0
    %1198 = vmatprep.subr.bf16.mxu0 0
    %1199 = vmatpush1.bf16.msra.mxu0 0
    %1200 = vmatprep.subr.bf16.mxu0 0
    %1201 = vmatpush1.bf16.msra.mxu0 0
    %1202 = vmatprep.subr.bf16.mxu0 0
    %1203 = vmatpush1.bf16.msra.mxu0 0
    %1204 = vmatprep.subr.bf16.mxu0 0
    %1205 = vmatpush1.bf16.msra.mxu0 0
    %1206 = vmatprep.subr.bf16.mxu0 0
    %1207 = vmatpush1.bf16.msra.mxu0 0
    %1208 = vmatprep.subr.bf16.mxu0 0
    %1209 = vmatpush1.bf16.msra.mxu0 0
    %1210 = vmatprep.subr.bf16.mxu0 0
    %1211 = vmatpush1.bf16.msra.mxu0 0
    %1212 = vmatprep.subr.bf16.mxu0 0
    %1213 = vmatpush1.bf16.msra.mxu0 0
    %1214 = vmatprep.subr.bf16.mxu0 0
    %1215 = vmatpush1.bf16.msra.mxu0 0
    %1216 = vmatprep.subr.bf16.mxu0 0
    %1217 = vmatpush1.bf16.msra.mxu0 0
    %1218 = vmatprep.subr.bf16.mxu0 0
    %1219 = vmatpush1.bf16.msra.mxu0 0
    %1220 = vmatprep.subr.bf16.mxu0 0
    %1221 = vmatpush1.bf16.msra.mxu0 0
    %1222 = vmatprep.subr.bf16.mxu0 0
    %1223 = vmatpush1.bf16.msra.mxu0 0
    %1224 = vmatprep.mubr.bf16.mxu0 0
    %1225 = vmatmul.mubr.bf16.gmra.mrb[0].mxu0 %v1090
    %v1226 = vpop.f32.mrb[0].mxu0
    %v1227 = vadd.f32 0.0, %v1226
    %v1228 = vpop.f32.mrb[0].mxu0
    %v1229 = vadd.f32 0.0, %v1228
    %v1230 = vpop.f32.mrb[0].mxu0
    %v1231 = vpop.f32.mrb[0].mxu0
    %1232 = vdwg.mxu0
    %v1233 = vadd.f32 %v1060, %v1145
    %v1234 = vadd.f32 %v1061, %v1147
    %v1235 = vadd.f32 %v1062, %v1186
    %v1236 = vadd.f32 %v1063, %v1188
    %v1237 = vadd.f32 %v1064, %v1227
    %v1238 = vadd.f32 %v1065, %v1229
    %s1239 = scalar_lea.vmem %s0, 28
    %v1240 = vld [vmem:[%s1239] sm:$0xf]
    %1241 = vrot.lane.b32.xlu0 %v53, 91
    %v1242 = vpop.permute.xlu0 %1241
    %1243 = vrot.lane.b32.xlu0 %v54, 91
    %v1244 = vpop.permute.xlu0 %1243
    %1245 = vrot.lane.b32.xlu0 %v55, 91
    %v1246 = vpop.permute.xlu0 %1245
    %1247 = vrot.lane.b32.xlu0 %v56, 91
    %v1248 = vpop.permute.xlu0 %1247
    %1249 = vrot.lane.b32.xlu0 %v57, 91
    %v1250 = vpop.permute.xlu0 %1249
    %1251 = vrot.lane.b32.xlu0 %v58, 91
    %v1252 = vpop.permute.xlu0 %1251
    %1253 = vrot.lane.b32.xlu0 %v43, 91
    %v1254 = vpop.permute.xlu0 %1253
    %vm1255 = vcmask 744448
    %v1256 = vsel %vm1255, %v1242, %v1244
    %v1257 = vsel %vm1255, %v1244, %v1246
    %v1258 = vsel %vm1255, %v1246, %v1248
    %v1259 = vsel %vm1255, %v1248, %v1250
    %v1260 = vsel %vm1255, %v1250, %v1252
    %v1261 = vsel %vm1255, %v1252, %v1254
    %v1263 = vsel %vm84, %v1240, 0
    %v1266 = vsel %vm88, %v1256, 0
    %v1269 = vsel %vm88, %v1257, 0
    %v1272 = vsel %vm88, %v1258, 0
    %v1275 = vsel %vm88, %v1259, 0
    %v1278 = vsel %vm88, %v1260, 0
    %v1281 = vsel %vm88, %v1261, 0
    %1283 = vmatprep.subr.bf16.mxu0 %v1269
    %1284 = vmatpush1.bf16.msra.mxu0 %v1266
    %1285 = vmatprep.subr.bf16.mxu0 0
    %1286 = vmatpush1.bf16.msra.mxu0 0
    %1287 = vmatprep.subr.bf16.mxu0 0
    %1288 = vmatpush1.bf16.msra.mxu0 0
    %1289 = vmatprep.subr.bf16.mxu0 0
    %1290 = vmatpush1.bf16.msra.mxu0 0
    %1291 = vmatprep.subr.bf16.mxu0 0
    %1292 = vmatpush1.bf16.msra.mxu0 0
    %1293 = vmatprep.subr.bf16.mxu0 0
    %1294 = vmatpush1.bf16.msra.mxu0 0
    %1295 = vmatprep.subr.bf16.mxu0 0
    %1296 = vmatpush1.bf16.msra.mxu0 0
    %1297 = vmatprep.subr.bf16.mxu0 0
    %1298 = vmatpush1.bf16.msra.mxu0 0
    %1299 = vmatprep.subr.bf16.mxu0 0
    %1300 = vmatpush1.bf16.msra.mxu0 0
    %1301 = vmatprep.subr.bf16.mxu0 0
    %1302 = vmatpush1.bf16.msra.mxu0 0
    %1303 = vmatprep.subr.bf16.mxu0 0
    %1304 = vmatpush1.bf16.msra.mxu0 0
    %1305 = vmatprep.subr.bf16.mxu0 0
    %1306 = vmatpush1.bf16.msra.mxu0 0
    %1307 = vmatprep.subr.bf16.mxu0 0
    %1308 = vmatpush1.bf16.msra.mxu0 0
    %1309 = vmatprep.subr.bf16.mxu0 0
    %1310 = vmatpush1.bf16.msra.mxu0 0
    %1311 = vmatprep.subr.bf16.mxu0 0
    %1312 = vmatpush1.bf16.msra.mxu0 0
    %1313 = vmatprep.subr.bf16.mxu0 0
    %1314 = vmatpush1.bf16.msra.mxu0 0
    %1315 = vmatprep.mubr.bf16.mxu0 0
    %1316 = vmatmul.mubr.bf16.gmra.mrb[0].mxu0 %v1263
    %v1317 = vpop.f32.mrb[0].mxu0
    %v1318 = vadd.f32 0.0, %v1317
    %v1319 = vpop.f32.mrb[0].mxu0
    %v1320 = vadd.f32 0.0, %v1319
    %v1321 = vpop.f32.mrb[0].mxu0
    %v1322 = vpop.f32.mrb[0].mxu0
    %1323 = vdwg.mxu0
    %1324 = vmatprep.subr.bf16.mxu0 %v1275
    %1325 = vmatpush1.bf16.msra.mxu0 %v1272
    %1326 = vmatprep.subr.bf16.mxu0 0
    %1327 = vmatpush1.bf16.msra.mxu0 0
    %1328 = vmatprep.subr.bf16.mxu0 0
    %1329 = vmatpush1.bf16.msra.mxu0 0
    %1330 = vmatprep.subr.bf16.mxu0 0
    %1331 = vmatpush1.bf16.msra.mxu0 0
    %1332 = vmatprep.subr.bf16.mxu0 0
    %1333 = vmatpush1.bf16.msra.mxu0 0
    %1334 = vmatprep.subr.bf16.mxu0 0
    %1335 = vmatpush1.bf16.msra.mxu0 0
    %1336 = vmatprep.subr.bf16.mxu0 0
    %1337 = vmatpush1.bf16.msra.mxu0 0
    %1338 = vmatprep.subr.bf16.mxu0 0
    %1339 = vmatpush1.bf16.msra.mxu0 0
    %1340 = vmatprep.subr.bf16.mxu0 0
    %1341 = vmatpush1.bf16.msra.mxu0 0
    %1342 = vmatprep.subr.bf16.mxu0 0
    %1343 = vmatpush1.bf16.msra.mxu0 0
    %1344 = vmatprep.subr.bf16.mxu0 0
    %1345 = vmatpush1.bf16.msra.mxu0 0
    %1346 = vmatprep.subr.bf16.mxu0 0
    %1347 = vmatpush1.bf16.msra.mxu0 0
    %1348 = vmatprep.subr.bf16.mxu0 0
    %1349 = vmatpush1.bf16.msra.mxu0 0
    %1350 = vmatprep.subr.bf16.mxu0 0
    %1351 = vmatpush1.bf16.msra.mxu0 0
    %1352 = vmatprep.subr.bf16.mxu0 0
    %1353 = vmatpush1.bf16.msra.mxu0 0
    %1354 = vmatprep.subr.bf16.mxu0 0
    %1355 = vmatpush1.bf16.msra.mxu0 0
    %1356 = vmatprep.mubr.bf16.mxu0 0
    %1357 = vmatmul.mubr.bf16.gmra.mrb[0].mxu0 %v1263
    %v1358 = vpop.f32.mrb[0].mxu0
    %v1359 = vadd.f32 0.0, %v1358
    %v1360 = vpop.f32.mrb[0].mxu0
    %v1361 = vadd.f32 0.0, %v1360
    %v1362 = vpop.f32.mrb[0].mxu0
    %v1363 = vpop.f32.mrb[0].mxu0
    %1364 = vdwg.mxu0
    %1365 = vmatprep.subr.bf16.mxu0 %v1281
    %1366 = vmatpush1.bf16.msra.mxu0 %v1278
    %1367 = vmatprep.subr.bf16.mxu0 0
    %1368 = vmatpush1.bf16.msra.mxu0 0
    %1369 = vmatprep.subr.bf16.mxu0 0
    %1370 = vmatpush1.bf16.msra.mxu0 0
    %1371 = vmatprep.subr.bf16.mxu0 0
    %1372 = vmatpush1.bf16.msra.mxu0 0
    %1373 = vmatprep.subr.bf16.mxu0 0
    %1374 = vmatpush1.bf16.msra.mxu0 0
    %1375 = vmatprep.subr.bf16.mxu0 0
    %1376 = vmatpush1.bf16.msra.mxu0 0
    %1377 = vmatprep.subr.bf16.mxu0 0
    %1378 = vmatpush1.bf16.msra.mxu0 0
    %1379 = vmatprep.subr.bf16.mxu0 0
    %1380 = vmatpush1.bf16.msra.mxu0 0
    %1381 = vmatprep.subr.bf16.mxu0 0
    %1382 = vmatpush1.bf16.msra.mxu0 0
    %1383 = vmatprep.subr.bf16.mxu0 0
    %1384 = vmatpush1.bf16.msra.mxu0 0
    %1385 = vmatprep.subr.bf16.mxu0 0
    %1386 = vmatpush1.bf16.msra.mxu0 0
    %1387 = vmatprep.subr.bf16.mxu0 0
    %1388 = vmatpush1.bf16.msra.mxu0 0
    %1389 = vmatprep.subr.bf16.mxu0 0
    %1390 = vmatpush1.bf16.msra.mxu0 0
    %1391 = vmatprep.subr.bf16.mxu0 0
    %1392 = vmatpush1.bf16.msra.mxu0 0
    %1393 = vmatprep.subr.bf16.mxu0 0
    %1394 = vmatpush1.bf16.msra.mxu0 0
    %1395 = vmatprep.subr.bf16.mxu0 0
    %1396 = vmatpush1.bf16.msra.mxu0 0
    %1397 = vmatprep.mubr.bf16.mxu0 0
    %1398 = vmatmul.mubr.bf16.gmra.mrb[0].mxu0 %v1263
    %v1399 = vpop.f32.mrb[0].mxu0
    %v1400 = vadd.f32 0.0, %v1399
    %v1401 = vpop.f32.mrb[0].mxu0
    %v1402 = vadd.f32 0.0, %v1401
    %v1403 = vpop.f32.mrb[0].mxu0
    %v1404 = vpop.f32.mrb[0].mxu0
    %1405 = vdwg.mxu0
    %v1406 = vadd.f32 %v1233, %v1318
    %v1407 = vadd.f32 %v1234, %v1320
    %v1408 = vadd.f32 %v1235, %v1359
    %v1409 = vadd.f32 %v1236, %v1361
    %v1410 = vadd.f32 %v1237, %v1400
    %v1411 = vadd.f32 %v1238, %v1402
    %s1412 = scalar_lea.vmem %s0, 32
    %v1413 = vld [vmem:[%s1412] sm:$0xf]
    %1414 = vrot.lane.b32.xlu0 %v53, 90
    %v1415 = vpop.permute.xlu0 %1414
    %1416 = vrot.lane.b32.xlu0 %v54, 90
    %v1417 = vpop.permute.xlu0 %1416
    %1418 = vrot.lane.b32.xlu0 %v55, 90
    %v1419 = vpop.permute.xlu0 %1418
    %1420 = vrot.lane.b32.xlu0 %v56, 90
    %v1421 = vpop.permute.xlu0 %1420
    %1422 = vrot.lane.b32.xlu0 %v57, 90
    %v1423 = vpop.permute.xlu0 %1422
    %1424 = vrot.lane.b32.xlu0 %v58, 90
    %v1425 = vpop.permute.xlu0 %1424
    %1426 = vrot.lane.b32.xlu0 %v43, 90
    %v1427 = vpop.permute.xlu0 %1426
    %vm1428 = vcmask 736256
    %v1429 = vsel %vm1428, %v1415, %v1417
    %v1430 = vsel %vm1428, %v1417, %v1419
    %v1431 = vsel %vm1428, %v1419, %v1421
    %v1432 = vsel %vm1428, %v1421, %v1423
    %v1433 = vsel %vm1428, %v1423, %v1425
    %v1434 = vsel %vm1428, %v1425, %v1427
    %v1436 = vsel %vm84, %v1413, 0
    %v1439 = vsel %vm88, %v1429, 0
    %v1442 = vsel %vm88, %v1430, 0
    %v1445 = vsel %vm88, %v1431, 0
    %v1448 = vsel %vm88, %v1432, 0
    %v1451 = vsel %vm88, %v1433, 0
    %v1454 = vsel %vm88, %v1434, 0
    %1456 = vmatprep.subr.bf16.mxu0 %v1442
    %1457 = vmatpush1.bf16.msra.mxu0 %v1439
    %1458 = vmatprep.subr.bf16.mxu0 0
    %1459 = vmatpush1.bf16.msra.mxu0 0
    %1460 = vmatprep.subr.bf16.mxu0 0
    %1461 = vmatpush1.bf16.msra.mxu0 0
    %1462 = vmatprep.subr.bf16.mxu0 0
    %1463 = vmatpush1.bf16.msra.mxu0 0
    %1464 = vmatprep.subr.bf16.mxu0 0
    %1465 = vmatpush1.bf16.msra.mxu0 0
    %1466 = vmatprep.subr.bf16.mxu0 0
    %1467 = vmatpush1.bf16.msra.mxu0 0
    %1468 = vmatprep.subr.bf16.mxu0 0
    %1469 = vmatpush1.bf16.msra.mxu0 0
    %1470 = vmatprep.subr.bf16.mxu0 0
    %1471 = vmatpush1.bf16.msra.mxu0 0
    %1472 = vmatprep.subr.bf16.mxu0 0
    %1473 = vmatpush1.bf16.msra.mxu0 0
    %1474 = vmatprep.subr.bf16.mxu0 0
    %1475 = vmatpush1.bf16.msra.mxu0 0
    %1476 = vmatprep.subr.bf16.mxu0 0
    %1477 = vmatpush1.bf16.msra.mxu0 0
    %1478 = vmatprep.subr.bf16.mxu0 0
    %1479 = vmatpush1.bf16.msra.mxu0 0
    %1480 = vmatprep.subr.bf16.mxu0 0
    %1481 = vmatpush1.bf16.msra.mxu0 0
    %1482 = vmatprep.subr.bf16.mxu0 0
    %1483 = vmatpush1.bf16.msra.mxu0 0
    %1484 = vmatprep.subr.bf16.mxu0 0
    %1485 = vmatpush1.bf16.msra.mxu0 0
    %1486 = vmatprep.subr.bf16.mxu0 0
    %1487 = vmatpush1.bf16.msra.mxu0 0
    %1488 = vmatprep.mubr.bf16.mxu0 0
    %1489 = vmatmul.mubr.bf16.gmra.mrb[0].mxu0 %v1436
    %v1490 = vpop.f32.mrb[0].mxu0
    %v1491 = vadd.f32 0.0, %v1490
    %v1492 = vpop.f32.mrb[0].mxu0
    %v1493 = vadd.f32 0.0, %v1492
    %v1494 = vpop.f32.mrb[0].mxu0
    %v1495 = vpop.f32.mrb[0].mxu0
    %1496 = vdwg.mxu0
    %1497 = vmatprep.subr.bf16.mxu0 %v1448
    %1498 = vmatpush1.bf16.msra.mxu0 %v1445
    %1499 = vmatprep.subr.bf16.mxu0 0
    %1500 = vmatpush1.bf16.msra.mxu0 0
    %1501 = vmatprep.subr.bf16.mxu0 0
    %1502 = vmatpush1.bf16.msra.mxu0 0
    %1503 = vmatprep.subr.bf16.mxu0 0
    %1504 = vmatpush1.bf16.msra.mxu0 0
    %1505 = vmatprep.subr.bf16.mxu0 0
    %1506 = vmatpush1.bf16.msra.mxu0 0
    %1507 = vmatprep.subr.bf16.mxu0 0
    %1508 = vmatpush1.bf16.msra.mxu0 0
    %1509 = vmatprep.subr.bf16.mxu0 0
    %1510 = vmatpush1.bf16.msra.mxu0 0
    %1511 = vmatprep.subr.bf16.mxu0 0
    %1512 = vmatpush1.bf16.msra.mxu0 0
    %1513 = vmatprep.subr.bf16.mxu0 0
    %1514 = vmatpush1.bf16.msra.mxu0 0
    %1515 = vmatprep.subr.bf16.mxu0 0
    %1516 = vmatpush1.bf16.msra.mxu0 0
    %1517 = vmatprep.subr.bf16.mxu0 0
    %1518 = vmatpush1.bf16.msra.mxu0 0
    %1519 = vmatprep.subr.bf16.mxu0 0
    %1520 = vmatpush1.bf16.msra.mxu0 0
    %1521 = vmatprep.subr.bf16.mxu0 0
    %1522 = vmatpush1.bf16.msra.mxu0 0
    %1523 = vmatprep.subr.bf16.mxu0 0
    %1524 = vmatpush1.bf16.msra.mxu0 0
    %1525 = vmatprep.subr.bf16.mxu0 0
    %1526 = vmatpush1.bf16.msra.mxu0 0
    %1527 = vmatprep.subr.bf16.mxu0 0
    %1528 = vmatpush1.bf16.msra.mxu0 0
    %1529 = vmatprep.mubr.bf16.mxu0 0
    %1530 = vmatmul.mubr.bf16.gmra.mrb[0].mxu0 %v1436
    %v1531 = vpop.f32.mrb[0].mxu0
    %v1532 = vadd.f32 0.0, %v1531
    %v1533 = vpop.f32.mrb[0].mxu0
    %v1534 = vadd.f32 0.0, %v1533
    %v1535 = vpop.f32.mrb[0].mxu0
    %v1536 = vpop.f32.mrb[0].mxu0
    %1537 = vdwg.mxu0
    %1538 = vmatprep.subr.bf16.mxu0 %v1454
    %1539 = vmatpush1.bf16.msra.mxu0 %v1451
    %1540 = vmatprep.subr.bf16.mxu0 0
    %1541 = vmatpush1.bf16.msra.mxu0 0
    %1542 = vmatprep.subr.bf16.mxu0 0
    %1543 = vmatpush1.bf16.msra.mxu0 0
    %1544 = vmatprep.subr.bf16.mxu0 0
    %1545 = vmatpush1.bf16.msra.mxu0 0
    %1546 = vmatprep.subr.bf16.mxu0 0
    %1547 = vmatpush1.bf16.msra.mxu0 0
    %1548 = vmatprep.subr.bf16.mxu0 0
    %1549 = vmatpush1.bf16.msra.mxu0 0
    %1550 = vmatprep.subr.bf16.mxu0 0
    %1551 = vmatpush1.bf16.msra.mxu0 0
    %1552 = vmatprep.subr.bf16.mxu0 0
    %1553 = vmatpush1.bf16.msra.mxu0 0
    %1554 = vmatprep.subr.bf16.mxu0 0
    %1555 = vmatpush1.bf16.msra.mxu0 0
    %1556 = vmatprep.subr.bf16.mxu0 0
    %1557 = vmatpush1.bf16.msra.mxu0 0
    %1558 = vmatprep.subr.bf16.mxu0 0
    %1559 = vmatpush1.bf16.msra.mxu0 0
    %1560 = vmatprep.subr.bf16.mxu0 0
    %1561 = vmatpush1.bf16.msra.mxu0 0
    %1562 = vmatprep.subr.bf16.mxu0 0
    %1563 = vmatpush1.bf16.msra.mxu0 0
    %1564 = vmatprep.subr.bf16.mxu0 0
    %1565 = vmatpush1.bf16.msra.mxu0 0
    %1566 = vmatprep.subr.bf16.mxu0 0
    %1567 = vmatpush1.bf16.msra.mxu0 0
    %1568 = vmatprep.subr.bf16.mxu0 0
    %1569 = vmatpush1.bf16.msra.mxu0 0
    %1570 = vmatprep.mubr.bf16.mxu0 0
    %1571 = vmatmul.mubr.bf16.gmra.mrb[0].mxu0 %v1436
    %v1572 = vpop.f32.mrb[0].mxu0
    %v1573 = vadd.f32 0.0, %v1572
    %v1574 = vpop.f32.mrb[0].mxu0
    %v1575 = vadd.f32 0.0, %v1574
    %v1576 = vpop.f32.mrb[0].mxu0
    %v1577 = vpop.f32.mrb[0].mxu0
    %1578 = vdwg.mxu0
    %v1579 = vadd.f32 %v1406, %v1491
    %v1580 = vadd.f32 %v1407, %v1493
    %v1581 = vadd.f32 %v1408, %v1532
    %v1582 = vadd.f32 %v1409, %v1534
    %v1583 = vadd.f32 %v1410, %v1573
    %v1584 = vadd.f32 %v1411, %v1575
    %v1585 = vpack.c.bf16 %v1579, %v1579
    %v1586 = vpack.c.bf16 %v1580, %v1580
    %v1587 = vpack.c.bf16 %v1581, %v1581
    %v1588 = vpack.c.bf16 %v1582, %v1582
    %v1589 = vpack.c.bf16 %v1583, %v1583
    %v1590 = vpack.c.bf16 %v1584, %v1584
    %v1597 = vunpack.c.l.b16 %v1585
    %v1598 = vunpack.c.l.b16 %v1586
    %v1599 = vunpack.c.l.b16 %v1587
    %v1600 = vunpack.c.l.b16 %v1588
    %v1601 = vunpack.c.l.b16 %v1589
    %v1602 = vunpack.c.l.b16 %v1590
    %v1603 = vpack.c.b16 %v1598, %v1597
    %v1604 = vpack.c.b16 %v1600, %v1599
    %v1605 = vpack.c.b16 %v1602, %v1601
    %1609 = vst [vmem:[#allocation5] sm:$0xff] %v1603
    %1610 = vst [vmem:[#allocation5 + $0x8] sm:$0xff] %v1604
    %1611 = vst [vmem:[#allocation5 + $0x10] sm:$0xff] %v1605
    %v1612 = vld [vmem:[%s3] sm:$0x3f]
    %v1614 = vlaneseq
    %v1615 = vshrl.u32 %v1614, 7
    %v1616 = vsub.s32 0, %v1615
    %v1617 = vrot.slane %v1612, %v1616
    %v1618 = vlaneseq
    %v1619 = vshrl.u32 %v1618, 7
    %v1620 = vsub.s32 1, %v1619
    %v1621 = vrot.slane %v1612, %v1620
    %v1622 = vlaneseq
    %v1623 = vshrl.u32 %v1622, 7
    %v1624 = vsub.s32 2, %v1623
    %v1625 = vrot.slane %v1612, %v1624
    %v1626 = vlaneseq
    %v1627 = vshrl.u32 %v1626, 7
    %v1628 = vsub.s32 3, %v1627
    %v1629 = vrot.slane %v1612, %v1628
    %v1630 = vlaneseq
    %v1631 = vshrl.u32 %v1630, 7
    %v1632 = vsub.s32 4, %v1631
    %v1633 = vrot.slane %v1612, %v1632
    %v1634 = vlaneseq
    %v1635 = vshrl.u32 %v1634, 7
    %v1636 = vsub.s32 5, %v1635
    %v1637 = vrot.slane %v1612, %v1636
    %v1644 = vmul.f32 %v1579, %v1617
    %v1645 = vmul.f32 %v1580, %v1621
    %v1646 = vmul.f32 %v1581, %v1625
    %v1647 = vmul.f32 %v1582, %v1629
    %v1648 = vmul.f32 %v1583, %v1633
    %v1649 = vmul.f32 %v1584, %v1637
    %v1650 = vadd.f32 %v1644, %v1645
    %v1651 = vadd.f32 %v1650, %v1646
    %v1652 = vadd.f32 %v1651, %v1647
    %v1653 = vadd.f32 %v1652, %v1648
    %v1654 = vadd.f32 %v1653, %v1649
    %1655 = vadd.xlane.f32.xlu0 %v1654
    %v1656 = vpop.xlane.xlu0 %1655
    %vm1657 = vcmask 7168
    %1658 = vst.msk [vmem:[%s5] sm:$0xff] %vm1657, %v1656
    %v1659 = vmul.f32 %v1644, %v1644
    %v1660 = vmul.f32 %v1645, %v1645
    %v1661 = vmul.f32 %v1646, %v1646
    %v1662 = vmul.f32 %v1647, %v1647
    %v1663 = vmul.f32 %v1648, %v1648
    %v1664 = vmul.f32 %v1649, %v1649
    %v1665 = vadd.f32 %v1659, %v1660
    %v1666 = vadd.f32 %v1665, %v1661
    %v1667 = vadd.f32 %v1666, %v1662
    %v1668 = vadd.f32 %v1667, %v1663
    %v1669 = vadd.f32 %v1668, %v1664
    %1670 = vadd.xlane.f32.xlu0 %v1669
    %v1671 = vpop.xlane.xlu0 %1670
    %1672 = vst.msk [vmem:[%s6] sm:$0xff] %vm1657, %v1671
    // Predicated region
    $region22: #{tpu_custom_call.1} parent=1 // pred_check
      _
    $region23: #{tpu_custom_call.1} parent=1 // pred_check_branch
      %1674 = sbr.rel (0) target = $region25
    $region24: #{tpu_custom_call.1} parent=1 // pred_region
      %s1676 = ssub.s32 384, 384
      %1677 = vsyncadd [#allocation4], %s1676
      %s1679 = sshll.u32 [#allocation5], 4
      %s1680 = int_to_ptr.vmem [resolvable:$true] %s1679
      %1682 = dma.vmem_to_hbm [thread:$0]  %s1680, 384, %s4, [#allocation4]
    $region25: #{tpu_custom_call.1} parent=1 // pred_fallthru
      _
    // Predicated region
    $region26: #{tpu_custom_call.1} parent=1 // pred_check
      _
    $region27: #{tpu_custom_call.1} parent=1 // pred_check_branch
      %1684 = sbr.rel (0) target = $region29
    $region28: #{tpu_custom_call.1} parent=1 // pred_region
      _
    $region29: #{tpu_custom_call.1} parent=1 // pred_fallthru
      _
    // Predicated region
    $region30: #{tpu_custom_call.1} parent=1 // pred_check
      _
    $region31: #{tpu_custom_call.1} parent=1 // pred_check_branch
      %1686 = sbr.rel (0) target = $region33
    $region32: #{tpu_custom_call.1} parent=1 // pred_region
      _
    $region33: #{tpu_custom_call.1} parent=1 // pred_fallthru
      _
    // Predicated region
    $region34: #{tpu_custom_call.1} parent=1 // pred_check
      _
    $region35: #{tpu_custom_call.1} parent=1 // pred_check_branch
      %1688 = sbr.rel (0) target = $region37
    $region36: #{tpu_custom_call.1} parent=1 // pred_region
      %1689 = dma.done [#allocation4], 384
    $region37: #{tpu_custom_call.1} parent=1 // pred_fallthru
      _
    // Predicated region
    $region38: #{tpu_custom_call.1} parent=1 // pred_check
      _
    $region39: #{tpu_custom_call.1} parent=1 // pred_check_branch
      %1691 = sbr.rel (0) target = $region41
    $region40: #{tpu_custom_call.1} parent=1 // pred_region
      _
    $region41: #{tpu_custom_call.1} parent=1 // pred_fallthru
      _
    // Predicated region
    $region42: #{tpu_custom_call.1} parent=1 // pred_check
      _
    $region43: #{tpu_custom_call.1} parent=1 // pred_check_branch
      %1693 = sbr.rel (0) target = $region45
    $region44: #{tpu_custom_call.1} parent=1 // pred_region
      _
    $region45: #{tpu_custom_call.1} parent=1 // pred_fallthru
      _
    %1694 = vsyncpa [#allocation3], 1
    %1695 = vsyncpa [#allocation4], 1

</llo_original>
